<compile_context>
chip_gen: v7x
topology: tpu7x:2x2x1
jax: 0.10.0
libtpu: 0.0.40
codegen_flags: <defaults>
</compile_context>

<pallas_src>
import numpy as np
import jax
import jax.numpy as jnp
from jax.experimental import pallas as pl
from jax.experimental.pallas import tpu as pltpu


# ----------------------------- Pallas kernel --------------------------------
def tictactoe_kernel(x_ref, w1_ref, b1_ref, w2_ref, b2_ref,
                     w3_ref, b3_ref, w4_ref, b4_ref, o_ref):
    # conv1 (as matmul) + ReLU : (TB, 18) @ (18, 384) -> (TB, 384)
    h = jnp.dot(x_ref[...], w1_ref[...], preferred_element_type=jnp.float32)
    h = jnp.maximum(h + b1_ref[...], 0.0)
    # conv2 (as matmul) + ReLU : (TB, 384) @ (384, 640) -> (TB, 640)
    h = jnp.dot(h.astype(jnp.bfloat16), w2_ref[...],
                preferred_element_type=jnp.float32)
    h = jnp.maximum(h + b2_ref[...], 0.0)
    # fc1 + ReLU : (TB, 640) @ (640, 128) -> (TB, 128)
    h = jnp.dot(h.astype(jnp.bfloat16), w3_ref[...],
                preferred_element_type=jnp.float32)
    h = jnp.maximum(h + b3_ref[...], 0.0)
    # fc2 + sigmoid : (TB, 128) @ (128, 128) -> (TB, 128)  (cols 9..127 padded)
    logits = jnp.dot(h.astype(jnp.bfloat16), w4_ref[...],
                     preferred_element_type=jnp.float32)
    o_ref[...] = jax.nn.sigmoid(logits + b4_ref[...]).astype(o_ref.dtype)
    # TODO(synk): kl_div / cross_entropy head variants not exercised (defaults
    # are False in the PyTorch module); sigmoid path implemented.


# ------------------------------ glue / setup ---------------------------------
def _round_up(n, m):
    return ((n + m - 1) // m) * m


def _choose_tile_b(B):
    """Batch tile: multiple of 16 (bf16 packing), capped at 1024 (v5e VMEM-safe),
    and for larger batches split so grid >= 2 (keeps both v7x TCs busy)."""
    if B <= 32:
        return _round_up(B, 16)
    tb = _round_up(-(-B // 2), 16)   # ~half the batch -> grid of (at least) 2
    return min(tb, 1024)


def _conv3x3_scatter():
    """Constant scatter tensor S[p_in, p_out, kh, kw] for 3x3 pad-1 conv on 3x3."""
    S = np.zeros((9, 9, 3, 3), dtype=np.float32)
    for io in range(3):
        for jo in range(3):
            for kh in range(3):
                for kw in range(3):
                    ii, jj = io + kh - 1, jo + kw - 1
                    if 0 <= ii < 3 and 0 <= jj < 3:
                        S[ii * 3 + jj, io * 3 + jo, kh, kw] = 1.0
    return S


_S_CONV = _conv3x3_scatter()


def conv3x3_same_to_matmul(w_oihw):
    """Lower a 3x3 pad-1 conv on a 3x3 board to a dense (C_in*9, C_out*9) matrix.

    For x flattened in NCHW order (index ci*9 + ii*3 + jj), x_flat @ M equals
    the NCHW-flattened conv output (index co*9 + io*3 + jo).  Jittable,
    constant-folds under jit.
    """
    c_out, c_in = w_oihw.shape[0], w_oihw.shape[1]
    big = jnp.einsum('oikl,pqkl->ipoq', w_oihw, _S_CONV)
    return big.reshape(c_in * 9, c_out * 9)


def init_params(key):
    ks = jax.random.split(key, 8)
    s = 0.1
    w_conv1 = jax.random.normal(ks[0], (32, 2, 3, 3), jnp.float32) * s
    b_conv1 = jax.random.normal(ks[1], (32,), jnp.float32) * s
    w_conv2 = jax.random.normal(ks[2], (64, 32, 3, 3), jnp.float32) * s
    b_conv2 = jax.random.normal(ks[3], (64,), jnp.float32) * s
    w_fc1 = jax.random.normal(ks[4], (128, 64 * 3 * 3), jnp.float32) * s
    b_fc1 = jax.random.normal(ks[5], (128,), jnp.float32) * s
    w_fc2 = jax.random.normal(ks[6], (9, 128), jnp.float32) * s
    b_fc2 = jax.random.normal(ks[7], (9,), jnp.float32) * s
    return (w_conv1, b_conv1, w_conv2, b_conv2, w_fc1, b_fc1, w_fc2, b_fc2)


@jax.jit
def tictactoe_forward(x_nchw, params):
    """x_nchw: (B, 2, 3, 3) float32 -> (B, 3, 3) float32 (sigmoid head)."""
    w_conv1, b_conv1, w_conv2, b_conv2, w_fc1, b_fc1, w_fc2, b_fc2 = params
    B = x_nchw.shape[0]

    # ---- parameter prep (tiny, fused/folded under jit) ----
    # Widths padded to multiples of 128: 288 -> 384, 576 -> 640.  Zero padding
    # is exact: padded activation cols are ReLU(0+0)=0 and feed zero weight rows.
    w1 = jnp.zeros((18, 384), jnp.bfloat16).at[:, :288].set(
        conv3x3_same_to_matmul(w_conv1).astype(jnp.bfloat16))
    b1 = jnp.zeros((1, 384), jnp.float32).at[:, :288].set(
        jnp.repeat(b_conv1, 9).reshape(1, 288))
    w2 = jnp.zeros((384, 640), jnp.bfloat16).at[:288, :576].set(
        conv3x3_same_to_matmul(w_conv2).astype(jnp.bfloat16))
    b2 = jnp.zeros((1, 640), jnp.float32).at[:, :576].set(
        jnp.repeat(b_conv2, 9).reshape(1, 576))
    w3 = jnp.zeros((640, 128), jnp.bfloat16).at[:576, :].set(
        w_fc1.T.astype(jnp.bfloat16))
    b3 = b_fc1.reshape(1, 128).astype(jnp.float32)
    # Lane-dense head: pad the 9-wide output to 128 columns (zeros elsewhere).
    w4 = jnp.zeros((128, 128), jnp.bfloat16).at[:, :9].set(
        w_fc2.T.astype(jnp.bfloat16))
    b4 = jnp.zeros((1, 128), jnp.float32).at[:, :9].set(b_fc2)

    # Input cast to bf16 in the wrapper (board entries are small ints -> exact).
    x_flat = x_nchw.reshape(B, 2 * 9).astype(jnp.bfloat16)          # NCHW flatten

    TB = _choose_tile_b(B)
    B_pad = _round_up(B, TB)
    if B_pad != B:
        x_flat = jnp.pad(x_flat, ((0, B_pad - B), (0, 0)))

    grid = (B_pad // TB,)
    weight_spec = lambda shape: pl.BlockSpec(shape, lambda i: (0, 0))
    # NOTE: weights keep a constant block index, so they are fetched once and
    # stay resident in VMEM across grid steps (no per-step re-DMA).

    flops = 2 * B_pad * (18 * 384 + 384 * 640 + 640 * 128 + 128 * 128)
    weight_bytes = ((18 * 384 + 384 * 640 + 640 * 128 + 128 * 128) * 2
                    + (384 + 640 + 128 + 128) * 4)
    cost = pl.CostEstimate(
        flops=flops,
        transcendentals=B_pad * 128,                       # sigmoid exp's
        bytes_accessed=B_pad * 18 * 2 + B_pad * 128 * 2 + weight_bytes,
    )

    out = pl.pallas_call(
        tictactoe_kernel,
        out_shape=jax.ShapeDtypeStruct((B_pad, 128), jnp.bfloat16),
        grid=grid,
        in_specs=[
            pl.BlockSpec((TB, 18), lambda i: (i, 0)),   # x: tiled over batch
            weight_spec((18, 384)),                     # w1 (resident)
            weight_spec((1, 384)),                      # b1
            weight_spec((384, 640)),                    # w2
            weight_spec((1, 640)),                      # b2
            weight_spec((640, 128)),                    # w3
            weight_spec((1, 128)),                      # b3
            weight_spec((128, 128)),                    # w4 (padded head)
            weight_spec((1, 128)),                      # b4 (padded head)
        ],
        out_specs=pl.BlockSpec((TB, 128), lambda i: (i, 0)),
        compiler_params=pltpu.CompilerParams(
            dimension_semantics=("parallel",),
            vmem_limit_bytes=32 * 1024 * 1024),
        cost_estimate=cost,
    )(x_flat, w1, b1, w2, b2, w3, b3, w4, b4)

    # Padded rows/cols (sigmoid(0)=0.5 etc.) dropped here; cast back to f32 to
    # match the PyTorch module's output dtype.
    return out[:B, :9].astype(jnp.float32).reshape(B, 3, 3)


# ----------------------------- pure-JAX reference ----------------------------
@jax.jit
def reference_forward(x_nchw, params):
    w_conv1, b_conv1, w_conv2, b_conv2, w_fc1, b_fc1, w_fc2, b_fc2 = params
    dn = ('NCHW', 'OIHW', 'NCHW')
    h = jax.lax.conv_general_dilated(x_nchw, w_conv1, (1, 1),
                                     ((1, 1), (1, 1)), dimension_numbers=dn)
    h = jax.nn.relu(h + b_conv1[None, :, None, None])
    h = jax.lax.conv_general_dilated(h, w_conv2, (1, 1),
                                     ((1, 1), (1, 1)), dimension_numbers=dn)
    h = jax.nn.relu(h + b_conv2[None, :, None, None])
    h = h.reshape(-1, 64 * 3 * 3)
    h = jax.nn.relu(h @ w_fc1.T + b_fc1)
    out = jax.nn.sigmoid(h @ w_fc2.T + b_fc2)
    return out.reshape(-1, 3, 3)


if __name__ == "__main__":
    key = jax.random.PRNGKey(0)
    k_x, k_p = jax.random.split(key)

    B = 8
    # Tic-tac-toe board: 2 occupancy planes of shape 3x3.
    x = (jax.random.uniform(k_x, (B, 2, 3, 3)) > 0.5).astype(jnp.float32)
    params = init_params(k_p)

    out = jax.block_until_ready(tictactoe_forward(x, params))
    ref = jax.block_until_ready(reference_forward(x, params))

    assert out.shape == (B, 3, 3)
    # bf16 matmul operands + bf16 output (f32 accumulation) -> loose tolerance.
    np.testing.assert_allclose(np.asarray(out), np.asarray(ref),
                               rtol=2e-2, atol=2e-2)
    print("KERNEL_OK")
</pallas_src>

<mosaic_0001>
module attributes {stable_mosaic.version = 11 : i64} {
  func.func @tictactoe_kernel(%arg0: i32, %arg1: memref<16x18xbf16, #tpu.memory_space<vmem>>, %arg2: memref<18x384xbf16, #tpu.memory_space<vmem>>, %arg3: memref<1x384xf32, #tpu.memory_space<vmem>>, %arg4: memref<384x640xbf16, #tpu.memory_space<vmem>>, %arg5: memref<1x640xf32, #tpu.memory_space<vmem>>, %arg6: memref<640x128xbf16, #tpu.memory_space<vmem>>, %arg7: memref<1x128xf32, #tpu.memory_space<vmem>>, %arg8: memref<128x128xbf16, #tpu.memory_space<vmem>>, %arg9: memref<1x128xf32, #tpu.memory_space<vmem>>, %arg10: memref<16x128xbf16, #tpu.memory_space<vmem>>) attributes {dimension_semantics = [#tpu.dimension_semantics<parallel>], iteration_bounds = array<i64: 1>, scalar_prefetch = 0 : i64, scratch_operands = 0 : i64, tpu.core_type = #tpu.core_type<tc>, window_params = [{transform_indices = @transform_0, window_bounds = array<i64: 16, 18>}, {pipeline_mode = #tpu.pipeline_mode<synchronous>, transform_indices = @transform_1, window_bounds = array<i64: 18, 384>}, {pipeline_mode = #tpu.pipeline_mode<synchronous>, transform_indices = @transform_2, window_bounds = array<i64: 1, 384>}, {pipeline_mode = #tpu.pipeline_mode<synchronous>, transform_indices = @transform_3, window_bounds = array<i64: 384, 640>}, {pipeline_mode = #tpu.pipeline_mode<synchronous>, transform_indices = @transform_4, window_bounds = array<i64: 1, 640>}, {pipeline_mode = #tpu.pipeline_mode<synchronous>, transform_indices = @transform_5, window_bounds = array<i64: 640, 128>}, {pipeline_mode = #tpu.pipeline_mode<synchronous>, transform_indices = @transform_6, window_bounds = array<i64: 1, 128>}, {pipeline_mode = #tpu.pipeline_mode<synchronous>, transform_indices = @transform_7, window_bounds = array<i64: 128, 128>}, {pipeline_mode = #tpu.pipeline_mode<synchronous>, transform_indices = @transform_8, window_bounds = array<i64: 1, 128>}, {transform_indices = @transform_9, window_bounds = array<i64: 16, 128>}]} {
    %c0 = arith.constant 0 : index
    %c0_0 = arith.constant 0 : index
    %0 = vector.load %arg1[%c0, %c0_0] : memref<16x18xbf16, #tpu.memory_space<vmem>>, vector<16x18xbf16>
    %c0_1 = arith.constant 0 : index
    %c0_2 = arith.constant 0 : index
    %1 = vector.load %arg2[%c0_1, %c0_2] : memref<18x384xbf16, #tpu.memory_space<vmem>>, vector<18x384xbf16>
    %cst = arith.constant dense<0.000000e+00> : vector<16x384xf32>
    %2 = tpu.matmul %0, %1, %cst {dimension_numbers = #tpu.dot_dimension_numbers<[1], [0], [0], [1], [0, 0, 1, 1], [], []>} : vector<16x18xbf16>, vector<18x384xbf16>, vector<16x384xf32> -> vector<16x384xf32>
    %c0_3 = arith.constant 0 : index
    %c0_4 = arith.constant 0 : index
    %3 = vector.load %arg3[%c0_3, %c0_4] : memref<1x384xf32, #tpu.memory_space<vmem>>, vector<1x384xf32>
    %4 = vector.broadcast %3 : vector<1x384xf32> to vector<16x384xf32>
    %5 = arith.addf %2, %4 : vector<16x384xf32>
    %cst_5 = arith.constant 0.000000e+00 : f32
    %6 = vector.broadcast %cst_5 : f32 to vector<16x384xf32>
    %7 = arith.maximumf %5, %6 : vector<16x384xf32>
    %8 = arith.truncf %7 : vector<16x384xf32> to vector<16x384xbf16>
    %c0_6 = arith.constant 0 : index
    %c0_7 = arith.constant 0 : index
    %9 = vector.load %arg4[%c0_6, %c0_7] : memref<384x640xbf16, #tpu.memory_space<vmem>>, vector<384x640xbf16>
    %cst_8 = arith.constant dense<0.000000e+00> : vector<16x640xf32>
    %10 = tpu.matmul %8, %9, %cst_8 {dimension_numbers = #tpu.dot_dimension_numbers<[1], [0], [0], [1], [0, 0, 1, 1], [], []>} : vector<16x384xbf16>, vector<384x640xbf16>, vector<16x640xf32> -> vector<16x640xf32>
    %c0_9 = arith.constant 0 : index
    %c0_10 = arith.constant 0 : index
    %11 = vector.load %arg5[%c0_9, %c0_10] : memref<1x640xf32, #tpu.memory_space<vmem>>, vector<1x640xf32>
    %12 = vector.broadcast %11 : vector<1x640xf32> to vector<16x640xf32>
    %13 = arith.addf %10, %12 : vector<16x640xf32>
    %cst_11 = arith.constant 0.000000e+00 : f32
    %14 = vector.broadcast %cst_11 : f32 to vector<16x640xf32>
    %15 = arith.maximumf %13, %14 : vector<16x640xf32>
    %16 = arith.truncf %15 : vector<16x640xf32> to vector<16x640xbf16>
    %c0_12 = arith.constant 0 : index
    %c0_13 = arith.constant 0 : index
    %17 = vector.load %arg6[%c0_12, %c0_13] : memref<640x128xbf16, #tpu.memory_space<vmem>>, vector<640x128xbf16>
    %cst_14 = arith.constant dense<0.000000e+00> : vector<16x128xf32>
    %18 = tpu.matmul %16, %17, %cst_14 {dimension_numbers = #tpu.dot_dimension_numbers<[1], [0], [0], [1], [0, 0, 1, 1], [], []>} : vector<16x640xbf16>, vector<640x128xbf16>, vector<16x128xf32> -> vector<16x128xf32>
    %c0_15 = arith.constant 0 : index
    %c0_16 = arith.constant 0 : index
    %19 = vector.load %arg7[%c0_15, %c0_16] : memref<1x128xf32, #tpu.memory_space<vmem>>, vector<1x128xf32>
    %20 = vector.broadcast %19 : vector<1x128xf32> to vector<16x128xf32>
    %21 = arith.addf %18, %20 : vector<16x128xf32>
    %cst_17 = arith.constant 0.000000e+00 : f32
    %22 = vector.broadcast %cst_17 : f32 to vector<16x128xf32>
    %23 = arith.maximumf %21, %22 : vector<16x128xf32>
    %24 = arith.truncf %23 : vector<16x128xf32> to vector<16x128xbf16>
    %c0_18 = arith.constant 0 : index
    %c0_19 = arith.constant 0 : index
    %25 = vector.load %arg8[%c0_18, %c0_19] : memref<128x128xbf16, #tpu.memory_space<vmem>>, vector<128x128xbf16>
    %cst_20 = arith.constant dense<0.000000e+00> : vector<16x128xf32>
    %26 = tpu.matmul %24, %25, %cst_20 {dimension_numbers = #tpu.dot_dimension_numbers<[1], [0], [0], [1], [0, 0, 1, 1], [], []>} : vector<16x128xbf16>, vector<128x128xbf16>, vector<16x128xf32> -> vector<16x128xf32>
    %c0_21 = arith.constant 0 : index
    %c0_22 = arith.constant 0 : index
    %27 = vector.load %arg9[%c0_21, %c0_22] : memref<1x128xf32, #tpu.memory_space<vmem>>, vector<1x128xf32>
    %28 = vector.broadcast %27 : vector<1x128xf32> to vector<16x128xf32>
    %29 = arith.addf %26, %28 : vector<16x128xf32>
    %30 = arith.negf %29 : vector<16x128xf32>
    %31 = math.exp %30 : vector<16x128xf32>
    %cst_23 = arith.constant 1.000000e+00 : f32
    %32 = vector.broadcast %cst_23 : f32 to vector<16x128xf32>
    %33 = arith.addf %32, %31 : vector<16x128xf32>
    %34 = arith.divf %32, %33 : vector<16x128xf32>
    %35 = arith.truncf %34 : vector<16x128xf32> to vector<16x128xbf16>
    %c0_24 = arith.constant 0 : index
    %c0_25 = arith.constant 0 : index
    %36 = vector.load %arg10[%c0_24, %c0_25] : memref<16x128xbf16, #tpu.memory_space<vmem>>, vector<16x128xbf16>
    tpu.vector_store %arg10[%c0_24, %c0_25], %35 {strides = array<i32>} : memref<16x128xbf16, #tpu.memory_space<vmem>>, vector<16x128xbf16>,
    return
  }
  func.func @transform_0(%arg0: i32) -> (i32, i32) {
    %c0_i32 = arith.constant 0 : i32
    %c0_i32_0 = arith.constant 0 : i32
    return %arg0, %c0_i32 : i32, i32
  }
  func.func @transform_1(%arg0: i32) -> (i32, i32) {
    %c0_i32 = arith.constant 0 : i32
    %c0_i32_0 = arith.constant 0 : i32
    %c0_i32_1 = arith.constant 0 : i32
    return %c0_i32, %c0_i32_0 : i32, i32
  }
  func.func @transform_2(%arg0: i32) -> (i32, i32) {
    %c0_i32 = arith.constant 0 : i32
    %c0_i32_0 = arith.constant 0 : i32
    %c0_i32_1 = arith.constant 0 : i32
    return %c0_i32, %c0_i32_0 : i32, i32
  }
  func.func @transform_3(%arg0: i32) -> (i32, i32) {
    %c0_i32 = arith.constant 0 : i32
    %c0_i32_0 = arith.constant 0 : i32
    %c0_i32_1 = arith.constant 0 : i32
    return %c0_i32, %c0_i32_0 : i32, i32
  }
  func.func @transform_4(%arg0: i32) -> (i32, i32) {
    %c0_i32 = arith.constant 0 : i32
    %c0_i32_0 = arith.constant 0 : i32
    %c0_i32_1 = arith.constant 0 : i32
    return %c0_i32, %c0_i32_0 : i32, i32
  }
  func.func @transform_5(%arg0: i32) -> (i32, i32) {
    %c0_i32 = arith.constant 0 : i32
    %c0_i32_0 = arith.constant 0 : i32
    %c0_i32_1 = arith.constant 0 : i32
    return %c0_i32, %c0_i32_0 : i32, i32
  }
  func.func @transform_6(%arg0: i32) -> (i32, i32) {
    %c0_i32 = arith.constant 0 : i32
    %c0_i32_0 = arith.constant 0 : i32
    %c0_i32_1 = arith.constant 0 : i32
    return %c0_i32, %c0_i32_0 : i32, i32
  }
  func.func @transform_7(%arg0: i32) -> (i32, i32) {
    %c0_i32 = arith.constant 0 : i32
    %c0_i32_0 = arith.constant 0 : i32
    %c0_i32_1 = arith.constant 0 : i32
    return %c0_i32, %c0_i32_0 : i32, i32
  }
  func.func @transform_8(%arg0: i32) -> (i32, i32) {
    %c0_i32 = arith.constant 0 : i32
    %c0_i32_0 = arith.constant 0 : i32
    %c0_i32_1 = arith.constant 0 : i32
    return %c0_i32, %c0_i32_0 : i32, i32
  }
  func.func @transform_9(%arg0: i32) -> (i32, i32) {
    %c0_i32 = arith.constant 0 : i32
    %c0_i32_0 = arith.constant 0 : i32
    return %arg0, %c0_i32 : i32, i32
  }
}

</mosaic_0001>

<llo_original>
// kernel: tictactoe_forward.1
$region0: #{tictactoe_forward.1}
  #allocation0 [shape = 'u32[]', space=smem, size = 0x4, offset = 0x4, fixed_abs, tag = 'smem constant byte address 0x4 - core index']
  #allocation1 [shape = 'u32[144,128]{1,0:T(1,128)}', space=vmem, size = 0x12000, scoped, tag = 'internal scratch']
  %s0 = inlined_call_operand.vmem [shape: bf16[16,18], index: 0, kind: input, shape index: {}]
  %s1 = inlined_call_operand.vmem [shape: bf16[18,384], index: 1, kind: input, shape index: {}]
  %s2 = inlined_call_operand.vmem [shape: f32[1,384], index: 2, kind: input, shape index: {}]
  %s3 = inlined_call_operand.vmem [shape: bf16[384,640], index: 3, kind: input, shape index: {}]
  %s4 = inlined_call_operand.vmem [shape: f32[1,640], index: 4, kind: input, shape index: {}]
  %s5 = inlined_call_operand.vmem [shape: bf16[640,128], index: 5, kind: input, shape index: {}]
  %s6 = inlined_call_operand.vmem [shape: f32[1,128], index: 6, kind: input, shape index: {}]
  %s7 = inlined_call_operand.vmem [shape: bf16[128,128], index: 7, kind: input, shape index: {}]
  %s8 = inlined_call_operand.vmem [shape: f32[1,128], index: 8, kind: input, shape index: {}]
  %s9 = inlined_call_operand.vmem [shape: bf16[16,128], index: 9, kind: output, shape index: {}]
  %s10 = sld [smem:[#allocation0]]
  $region46: #{tictactoe_forward.1} parent=0
    _
  %s12 = ssub.s32 1, %s10
  %s13 = scalar_select 0, %s12, %s10
  // Predicated region
  $region2: #{tictactoe_forward.1} parent=0 // pred_check
    _
  $region3: #{tictactoe_forward.1} parent=0 // pred_check_branch
    %15 = sbr.rel (0) target = $region5
  $region4: #{tictactoe_forward.1} parent=0 // pred_region
    _
  $region5: #{tictactoe_forward.1} parent=0 // pred_fallthru
    _
  // Predicated region
  $region6: #{tictactoe_forward.1} parent=0 // pred_check
    _
  $region7: #{tictactoe_forward.1} parent=0 // pred_check_branch
    %17 = sbr.rel (0) target = $region9
  $region8: #{tictactoe_forward.1} parent=0 // pred_region
    _
  $region9: #{tictactoe_forward.1} parent=0 // pred_fallthru
    _
  // Predicated region
  $region10: #{tictactoe_forward.1} parent=0 // pred_check
    _
  $region11: #{tictactoe_forward.1} parent=0 // pred_check_branch
    %19 = sbr.rel (0) target = $region13
  $region12: #{tictactoe_forward.1} parent=0 // pred_region
    _
  $region13: #{tictactoe_forward.1} parent=0 // pred_fallthru
    _
  // Predicated region
  $region14: #{tictactoe_forward.1} parent=0 // pred_check
    _
  $region15: #{tictactoe_forward.1} parent=0 // pred_check_branch
    %21 = sbr.rel (0) target = $region17
  $region16: #{tictactoe_forward.1} parent=0 // pred_region
    _
  $region17: #{tictactoe_forward.1} parent=0 // pred_fallthru
    _
  // Predicated region
  $region18: #{tictactoe_forward.1} parent=0 // pred_check
    _
  $region19: #{tictactoe_forward.1} parent=0 // pred_check_branch
    %23 = sbr.rel (0) target = $region21
  $region20: #{tictactoe_forward.1} parent=0 // pred_region
    _
  $region21: #{tictactoe_forward.1} parent=0 // pred_fallthru
    _
  // Predicated region
  $region22: #{tictactoe_forward.1} parent=0 // pred_check
    _
  $region23: #{tictactoe_forward.1} parent=0 // pred_check_branch
    %25 = sbr.rel (0) target = $region25
  $region24: #{tictactoe_forward.1} parent=0 // pred_region
    _
  $region25: #{tictactoe_forward.1} parent=0 // pred_fallthru
    _
  // Predicated region
  $region26: #{tictactoe_forward.1} parent=0 // pred_check
    _
  $region27: #{tictactoe_forward.1} parent=0 // pred_check_branch
    %27 = sbr.rel (0) target = $region29
  $region28: #{tictactoe_forward.1} parent=0 // pred_region
    _
  $region29: #{tictactoe_forward.1} parent=0 // pred_fallthru
    _
  // Predicated region
  $region30: #{tictactoe_forward.1} parent=0 // pred_check
    _
  $region31: #{tictactoe_forward.1} parent=0 // pred_check_branch
    %29 = sbr.rel (0) target = $region33
  $region32: #{tictactoe_forward.1} parent=0 // pred_region
    _
  $region33: #{tictactoe_forward.1} parent=0 // pred_fallthru
    _
  // Predicated region
  $region34: #{tictactoe_forward.1} parent=0 // pred_check
    _
  $region35: #{tictactoe_forward.1} parent=0 // pred_check_branch
    %31 = sbr.rel (0) target = $region37
  $region36: #{tictactoe_forward.1} parent=0 // pred_region
    _
  $region37: #{tictactoe_forward.1} parent=0 // pred_fallthru
    _
  %v33 = vld [vmem:[%s0] sm:$0xf]
  %v34 = vld [vmem:[%s0 + $0x4] sm:$0xf]
  %v35 = vld [vmem:[%s1] sm:$0xff]
  %v36 = vld [vmem:[%s1 + $0x8] sm:$0xf]
  %v37 = vld [vmem:[%s1 + $0xc] sm:$0xff]
  %v38 = vld [vmem:[%s1 + $0x14] sm:$0xf]
  %v39 = vld [vmem:[%s1 + $0x18] sm:$0x11]
  %v40 = vld [vmem:[%s1 + $0x20] sm:$0x1]
  %v41 = vld [vmem:[%s2] sm:$0x7]
  %v43 = vlaneseq
  %v44 = vshrl.u32 %v43, 7
  %v45 = vsub.s32 0, %v44
  %v46 = vrot.slane %v41, %v45
  %v47 = vlaneseq
  %v48 = vshrl.u32 %v47, 7
  %v49 = vsub.s32 1, %v48
  %v50 = vrot.slane %v41, %v49
  %v51 = vlaneseq
  %v52 = vshrl.u32 %v51, 7
  %v53 = vsub.s32 2, %v52
  %v54 = vrot.slane %v41, %v53
  %v60 = vunpack.c.l.b16 %v33
  %v61 = vunpack.c.l.b16 %v34
  %v62 = vpack.c.b16 %v61, %v60
  %v69 = vunpack.c.l.b16 %v35
  %v70 = vunpack.c.h.b16 %v35
  %v71 = vunpack.c.l.b16 %v36
  %v72 = vunpack.c.l.b16 %v37
  %v73 = vunpack.c.h.b16 %v37
  %v74 = vunpack.c.l.b16 %v38
  %v75 = vunpack.c.l.b16 %v39
  %v76 = vunpack.c.h.b16 %v39
  %v77 = vunpack.c.l.b16 %v40
  %v78 = vpack.c.b16 %v72, %v69
  %v79 = vpack.c.b16 %v73, %v70
  %v80 = vpack.c.b16 %v74, %v71
  %v81 = vpack.c.b16 %v75, %v75
  %v82 = vpack.c.b16 %v76, %v76
  %v83 = vpack.c.b16 %v77, %v77
  %vm87 = vcmask 146432
  %v89 = vsel %vm87, %v62, 0
  %vm91 = vcmask 1040384
  %v93 = vsel %vm91, %v81, 0
  %v96 = vsel %vm91, %v82, 0
  %v99 = vsel %vm91, %v83, 0
  %101 = vmatprep.subr.bf16.mxu0 %v79
  %102 = vmatpush1.bf16.msra.mxu0 %v78
  %103 = vmatprep.subr.bf16.mxu0 %v96
  %104 = vmatpush1.bf16.msra.mxu0 %v93
  %105 = vmatprep.subr.bf16.mxu0 0
  %106 = vmatpush1.bf16.msra.mxu0 0
  %107 = vmatprep.subr.bf16.mxu0 0
  %108 = vmatpush1.bf16.msra.mxu0 0
  %109 = vmatprep.subr.bf16.mxu0 0
  %110 = vmatpush1.bf16.msra.mxu0 0
  %111 = vmatprep.subr.bf16.mxu0 0
  %112 = vmatpush1.bf16.msra.mxu0 0
  %113 = vmatprep.subr.bf16.mxu0 0
  %114 = vmatpush1.bf16.msra.mxu0 0
  %115 = vmatprep.subr.bf16.mxu0 0
  %116 = vmatpush1.bf16.msra.mxu0 0
  %117 = vmatprep.subr.bf16.mxu0 0
  %118 = vmatpush1.bf16.msra.mxu0 0
  %119 = vmatprep.subr.bf16.mxu0 0
  %120 = vmatpush1.bf16.msra.mxu0 0
  %121 = vmatprep.subr.bf16.mxu0 0
  %122 = vmatpush1.bf16.msra.mxu0 0
  %123 = vmatprep.subr.bf16.mxu0 0
  %124 = vmatpush1.bf16.msra.mxu0 0
  %125 = vmatprep.subr.bf16.mxu0 0
  %126 = vmatpush1.bf16.msra.mxu0 0
  %127 = vmatprep.subr.bf16.mxu0 0
  %128 = vmatpush1.bf16.msra.mxu0 0
  %129 = vmatprep.subr.bf16.mxu0 0
  %130 = vmatpush1.bf16.msra.mxu0 0
  %131 = vmatprep.subr.bf16.mxu0 0
  %132 = vmatpush1.bf16.msra.mxu0 0
  %133 = vmatprep.mubr.bf16.mxu0 0
  %134 = vmatmul.mubr.bf16.gmra.mrb[0].mxu0 %v89
  %v135 = vpop.f32.mrb[0].mxu0
  %v136 = vadd.f32 %v46, %v135
  %v137 = vpop.f32.mrb[0].mxu0
  %v138 = vadd.f32 %v50, %v137
  %v139 = vpop.f32.mrb[0].mxu0
  %v140 = vadd.f32 %v46, %v139
  %v141 = vpop.f32.mrb[0].mxu0
  %v142 = vadd.f32 %v50, %v141
  %143 = vdwg.mxu0
  %144 = vmatprep.subr.bf16.mxu0 0
  %145 = vmatpush1.bf16.msra.mxu0 %v80
  %146 = vmatprep.subr.bf16.mxu0 0
  %147 = vmatpush1.bf16.msra.mxu0 %v99
  %148 = vmatprep.subr.bf16.mxu0 0
  %149 = vmatpush1.bf16.msra.mxu0 0
  %150 = vmatprep.subr.bf16.mxu0 0
  %151 = vmatpush1.bf16.msra.mxu0 0
  %152 = vmatprep.subr.bf16.mxu0 0
  %153 = vmatpush1.bf16.msra.mxu0 0
  %154 = vmatprep.subr.bf16.mxu0 0
  %155 = vmatpush1.bf16.msra.mxu0 0
  %156 = vmatprep.subr.bf16.mxu0 0
  %157 = vmatpush1.bf16.msra.mxu0 0
  %158 = vmatprep.subr.bf16.mxu0 0
  %159 = vmatpush1.bf16.msra.mxu0 0
  %160 = vmatprep.subr.bf16.mxu0 0
  %161 = vmatpush1.bf16.msra.mxu0 0
  %162 = vmatprep.subr.bf16.mxu0 0
  %163 = vmatpush1.bf16.msra.mxu0 0
  %164 = vmatprep.subr.bf16.mxu0 0
  %165 = vmatpush1.bf16.msra.mxu0 0
  %166 = vmatprep.subr.bf16.mxu0 0
  %167 = vmatpush1.bf16.msra.mxu0 0
  %168 = vmatprep.subr.bf16.mxu0 0
  %169 = vmatpush1.bf16.msra.mxu0 0
  %170 = vmatprep.subr.bf16.mxu0 0
  %171 = vmatpush1.bf16.msra.mxu0 0
  %172 = vmatprep.subr.bf16.mxu0 0
  %173 = vmatpush1.bf16.msra.mxu0 0
  %174 = vmatprep.subr.bf16.mxu0 0
  %175 = vmatpush1.bf16.msra.mxu0 0
  %176 = vmatprep.mubr.bf16.mxu0 0
  %177 = vmatmul.mubr.bf16.gmra.mrb[0].mxu0 %v89
  %v178 = vpop.f32.mrb[0].mxu0
  %v179 = vadd.f32 %v54, %v178
  %v180 = vpop.f32.mrb[0].mxu0
  %v181 = vpop.f32.mrb[0].mxu0
  %v182 = vadd.f32 %v54, %v181
  %v183 = vpop.f32.mrb[0].mxu0
  %184 = vdwg.mxu0
  %v185 = vmax.f32 %v136, 0.0
  %v186 = vmax.f32 %v138, 0.0
  %v187 = vmax.f32 %v179, 0.0
  %v188 = vmax.f32 %v140, 0.0
  %v189 = vmax.f32 %v142, 0.0
  %v190 = vmax.f32 %v182, 0.0
  %v191 = vpack.c.bf16 %v188, %v185
  %v192 = vpack.c.bf16 %v189, %v186
  %v193 = vpack.c.bf16 %v190, %v187
  %v194 = vld [vmem:[%s3] sm:$0xff]
  %v195 = vld [vmem:[%s3 + $0x8] sm:$0xff]
  %v196 = vld [vmem:[%s3 + $0x10] sm:$0xf]
  %v197 = vld [vmem:[%s3 + $0x14] sm:$0xff]
  %v198 = vld [vmem:[%s3 + $0x1c] sm:$0xff]
  %v199 = vld [vmem:[%s3 + $0x24] sm:$0xf]
  %v200 = vld [vmem:[%s3 + $0x28] sm:$0xff]
  %v201 = vld [vmem:[%s3 + $0x30] sm:$0xff]
  %v202 = vld [vmem:[%s3 + $0x38] sm:$0xf]
  %v203 = vld [vmem:[%s3 + $0x3c] sm:$0xff]
  %v204 = vld [vmem:[%s3 + $0x44] sm:$0xff]
  %v205 = vld [vmem:[%s3 + $0x4c] sm:$0xf]
  %v206 = vld [vmem:[%s3 + $0x50] sm:$0xff]
  %v207 = vld [vmem:[%s3 + $0x58] sm:$0xff]
  %v208 = vld [vmem:[%s3 + $0x60] sm:$0xf]
  %v209 = vld [vmem:[%s3 + $0x64] sm:$0xff]
  %v210 = vld [vmem:[%s3 + $0x6c] sm:$0xff]
  %v211 = vld [vmem:[%s3 + $0x74] sm:$0xf]
  %v212 = vld [vmem:[%s3 + $0x78] sm:$0xff]
  %v213 = vld [vmem:[%s3 + $0x80] sm:$0xff]
  %v214 = vld [vmem:[%s3 + $0x88] sm:$0xf]
  %v215 = vld [vmem:[%s3 + $0x8c] sm:$0xff]
  %v216 = vld [vmem:[%s3 + $0x94] sm:$0xff]
  %v217 = vld [vmem:[%s3 + $0x9c] sm:$0xf]
  %v218 = vld [vmem:[%s3 + $0xa0] sm:$0xff]
  %v219 = vld [vmem:[%s3 + $0xa8] sm:$0xff]
  %v220 = vld [vmem:[%s3 + $0xb0] sm:$0xf]
  %v221 = vld [vmem:[%s3 + $0xb4] sm:$0xff]
  %v222 = vld [vmem:[%s3 + $0xbc] sm:$0xff]
  %v223 = vld [vmem:[%s3 + $0xc4] sm:$0xf]
  %v224 = vld [vmem:[%s3 + $0xc8] sm:$0xff]
  %v225 = vld [vmem:[%s3 + $0xd0] sm:$0xff]
  %v226 = vld [vmem:[%s3 + $0xd8] sm:$0xf]
  %v227 = vld [vmem:[%s3 + $0xdc] sm:$0xff]
  %v228 = vld [vmem:[%s3 + $0xe4] sm:$0xff]
  %v229 = vld [vmem:[%s3 + $0xec] sm:$0xf]
  %v230 = vld [vmem:[%s3 + $0xf0] sm:$0xff]
  %v231 = vld [vmem:[%s3 + $0xf8] sm:$0xff]
  %v232 = vld [vmem:[%s3 + $0x100] sm:$0xf]
  %v233 = vld [vmem:[%s3 + $0x104] sm:$0xff]
  %v234 = vld [vmem:[%s3 + $0x10c] sm:$0xff]
  %v235 = vld [vmem:[%s3 + $0x114] sm:$0xf]
  %v236 = vld [vmem:[%s3 + $0x118] sm:$0xff]
  %v237 = vld [vmem:[%s3 + $0x120] sm:$0xff]
  %v238 = vld [vmem:[%s3 + $0x128] sm:$0xf]
  %v239 = vld [vmem:[%s3 + $0x12c] sm:$0xff]
  %v240 = vld [vmem:[%s3 + $0x134] sm:$0xff]
  %v241 = vld [vmem:[%s3 + $0x13c] sm:$0xf]
  %v242 = vld [vmem:[%s3 + $0x140] sm:$0xff]
  %v243 = vld [vmem:[%s3 + $0x148] sm:$0xff]
  %v244 = vld [vmem:[%s3 + $0x150] sm:$0xf]
  %v245 = vld [vmem:[%s3 + $0x154] sm:$0xff]
  %v246 = vld [vmem:[%s3 + $0x15c] sm:$0xff]
  %v247 = vld [vmem:[%s3 + $0x164] sm:$0xf]
  %v248 = vld [vmem:[%s3 + $0x168] sm:$0xff]
  %v249 = vld [vmem:[%s3 + $0x170] sm:$0xff]
  %v250 = vld [vmem:[%s3 + $0x178] sm:$0xf]
  %v251 = vld [vmem:[%s3 + $0x17c] sm:$0xff]
  %v252 = vld [vmem:[%s3 + $0x184] sm:$0xff]
  %v253 = vld [vmem:[%s3 + $0x18c] sm:$0xf]
  %v254 = vld [vmem:[%s3 + $0x190] sm:$0xff]
  %v255 = vld [vmem:[%s3 + $0x198] sm:$0xff]
  %v256 = vld [vmem:[%s3 + $0x1a0] sm:$0xf]
  %v257 = vld [vmem:[%s3 + $0x1a4] sm:$0xff]
  %v258 = vld [vmem:[%s3 + $0x1ac] sm:$0xff]
  %v259 = vld [vmem:[%s3 + $0x1b4] sm:$0xf]
  %v260 = vld [vmem:[%s3 + $0x1b8] sm:$0xff]
  %v261 = vld [vmem:[%s3 + $0x1c0] sm:$0xff]
  %v262 = vld [vmem:[%s3 + $0x1c8] sm:$0xf]
  %v263 = vld [vmem:[%s3 + $0x1cc] sm:$0xff]
  %v264 = vld [vmem:[%s3 + $0x1d4] sm:$0xff]
  %v265 = vld [vmem:[%s3 + $0x1dc] sm:$0xf]
  %v266 = vld [vmem:[%s3 + $0x1e0] sm:$0xff]
  %v267 = vld [vmem:[%s3 + $0x1e8] sm:$0xff]
  %v268 = vld [vmem:[%s3 + $0x1f0] sm:$0xf]
  %v269 = vld [vmem:[%s3 + $0x1f4] sm:$0xff]
  %v270 = vld [vmem:[%s3 + $0x1fc] sm:$0xff]
  %v271 = vld [vmem:[%s3 + $0x204] sm:$0xf]
  %v272 = vld [vmem:[%s3 + $0x208] sm:$0xff]
  %v273 = vld [vmem:[%s3 + $0x210] sm:$0xff]
  %v274 = vld [vmem:[%s3 + $0x218] sm:$0xf]
  %v275 = vld [vmem:[%s3 + $0x21c] sm:$0xff]
  %v276 = vld [vmem:[%s3 + $0x224] sm:$0xff]
  %v277 = vld [vmem:[%s3 + $0x22c] sm:$0xf]
  %v278 = vld [vmem:[%s3 + $0x230] sm:$0xff]
  %v279 = vld [vmem:[%s3 + $0x238] sm:$0xff]
  %v280 = vld [vmem:[%s3 + $0x240] sm:$0xf]
  %v281 = vld [vmem:[%s3 + $0x244] sm:$0xff]
  %v282 = vld [vmem:[%s3 + $0x24c] sm:$0xff]
  %v283 = vld [vmem:[%s3 + $0x254] sm:$0xf]
  %v284 = vld [vmem:[%s3 + $0x258] sm:$0xff]
  %v285 = vld [vmem:[%s3 + $0x260] sm:$0xff]
  %v286 = vld [vmem:[%s3 + $0x268] sm:$0xf]
  %v287 = vld [vmem:[%s3 + $0x26c] sm:$0xff]
  %v288 = vld [vmem:[%s3 + $0x274] sm:$0xff]
  %v289 = vld [vmem:[%s3 + $0x27c] sm:$0xf]
  %v290 = vld [vmem:[%s3 + $0x280] sm:$0xff]
  %v291 = vld [vmem:[%s3 + $0x288] sm:$0xff]
  %v292 = vld [vmem:[%s3 + $0x290] sm:$0xf]
  %v293 = vld [vmem:[%s3 + $0x294] sm:$0xff]
  %v294 = vld [vmem:[%s3 + $0x29c] sm:$0xff]
  %v295 = vld [vmem:[%s3 + $0x2a4] sm:$0xf]
  %v296 = vld [vmem:[%s3 + $0x2a8] sm:$0xff]
  %v297 = vld [vmem:[%s3 + $0x2b0] sm:$0xff]
  %v298 = vld [vmem:[%s3 + $0x2b8] sm:$0xf]
  %v299 = vld [vmem:[%s3 + $0x2bc] sm:$0xff]
  %v300 = vld [vmem:[%s3 + $0x2c4] sm:$0xff]
  %v301 = vld [vmem:[%s3 + $0x2cc] sm:$0xf]
  %v302 = vld [vmem:[%s3 + $0x2d0] sm:$0xff]
  %v303 = vld [vmem:[%s3 + $0x2d8] sm:$0xff]
  %v304 = vld [vmem:[%s3 + $0x2e0] sm:$0xf]
  %v305 = vld [vmem:[%s3 + $0x2e4] sm:$0xff]
  %v306 = vld [vmem:[%s3 + $0x2ec] sm:$0xff]
  %v307 = vld [vmem:[%s3 + $0x2f4] sm:$0xf]
  %v308 = vld [vmem:[%s3 + $0x2f8] sm:$0xff]
  %v309 = vld [vmem:[%s3 + $0x300] sm:$0xff]
  %v310 = vld [vmem:[%s3 + $0x308] sm:$0xf]
  %v311 = vld [vmem:[%s3 + $0x30c] sm:$0xff]
  %v312 = vld [vmem:[%s3 + $0x314] sm:$0xff]
  %v313 = vld [vmem:[%s3 + $0x31c] sm:$0xf]
  %v314 = vld [vmem:[%s3 + $0x320] sm:$0xff]
  %v315 = vld [vmem:[%s3 + $0x328] sm:$0xff]
  %v316 = vld [vmem:[%s3 + $0x330] sm:$0xf]
  %v317 = vld [vmem:[%s3 + $0x334] sm:$0xff]
  %v318 = vld [vmem:[%s3 + $0x33c] sm:$0xff]
  %v319 = vld [vmem:[%s3 + $0x344] sm:$0xf]
  %v320 = vld [vmem:[%s3 + $0x348] sm:$0xff]
  %v321 = vld [vmem:[%s3 + $0x350] sm:$0xff]
  %v322 = vld [vmem:[%s3 + $0x358] sm:$0xf]
  %v323 = vld [vmem:[%s3 + $0x35c] sm:$0xff]
  %v324 = vld [vmem:[%s3 + $0x364] sm:$0xff]
  %v325 = vld [vmem:[%s3 + $0x36c] sm:$0xf]
  %v326 = vld [vmem:[%s3 + $0x370] sm:$0xff]
  %v327 = vld [vmem:[%s3 + $0x378] sm:$0xff]
  %v328 = vld [vmem:[%s3 + $0x380] sm:$0xf]
  %v329 = vld [vmem:[%s3 + $0x384] sm:$0xff]
  %v330 = vld [vmem:[%s3 + $0x38c] sm:$0xff]
  %v331 = vld [vmem:[%s3 + $0x394] sm:$0xf]
  %v332 = vld [vmem:[%s3 + $0x398] sm:$0xff]
  %v333 = vld [vmem:[%s3 + $0x3a0] sm:$0xff]
  %v334 = vld [vmem:[%s3 + $0x3a8] sm:$0xf]
  %v335 = vld [vmem:[%s3 + $0x3ac] sm:$0xff]
  %v336 = vld [vmem:[%s3 + $0x3b4] sm:$0xff]
  %v337 = vld [vmem:[%s3 + $0x3bc] sm:$0xf]
  %v338 = vld [vmem:[%s4] sm:$0x1f]
  %v340 = vlaneseq
  %v341 = vshrl.u32 %v340, 7
  %v342 = vsub.s32 0, %v341
  %v343 = vrot.slane %v338, %v342
  %v344 = vlaneseq
  %v345 = vshrl.u32 %v344, 7
  %v346 = vsub.s32 1, %v345
  %v347 = vrot.slane %v338, %v346
  %v348 = vlaneseq
  %v349 = vshrl.u32 %v348, 7
  %v350 = vsub.s32 2, %v349
  %v351 = vrot.slane %v338, %v350
  %v352 = vlaneseq
  %v353 = vshrl.u32 %v352, 7
  %v354 = vsub.s32 3, %v353
  %v355 = vrot.slane %v338, %v354
  %v356 = vlaneseq
  %v357 = vshrl.u32 %v356, 7
  %v358 = vsub.s32 4, %v357
  %v359 = vrot.slane %v338, %v358
  %v509 = vunpack.c.l.b16 %v194
  %v510 = vunpack.c.h.b16 %v194
  %v511 = vunpack.c.l.b16 %v195
  %v512 = vunpack.c.h.b16 %v195
  %v513 = vunpack.c.l.b16 %v196
  %v514 = vunpack.c.l.b16 %v197
  %v515 = vunpack.c.h.b16 %v197
  %v516 = vunpack.c.l.b16 %v198
  %v517 = vunpack.c.h.b16 %v198
  %v518 = vunpack.c.l.b16 %v199
  %v519 = vunpack.c.l.b16 %v200
  %v520 = vunpack.c.h.b16 %v200
  %v521 = vunpack.c.l.b16 %v201
  %v522 = vunpack.c.h.b16 %v201
  %v523 = vunpack.c.l.b16 %v202
  %v524 = vunpack.c.l.b16 %v203
  %v525 = vunpack.c.h.b16 %v203
  %v526 = vunpack.c.l.b16 %v204
  %v527 = vunpack.c.h.b16 %v204
  %v528 = vunpack.c.l.b16 %v205
  %v529 = vunpack.c.l.b16 %v206
  %v530 = vunpack.c.h.b16 %v206
  %v531 = vunpack.c.l.b16 %v207
  %v532 = vunpack.c.h.b16 %v207
  %v533 = vunpack.c.l.b16 %v208
  %v534 = vunpack.c.l.b16 %v209
  %v535 = vunpack.c.h.b16 %v209
  %v536 = vunpack.c.l.b16 %v210
  %v537 = vunpack.c.h.b16 %v210
  %v538 = vunpack.c.l.b16 %v211
  %v539 = vunpack.c.l.b16 %v212
  %v540 = vunpack.c.h.b16 %v212
  %v541 = vunpack.c.l.b16 %v213
  %v542 = vunpack.c.h.b16 %v213
  %v543 = vunpack.c.l.b16 %v214
  %v544 = vunpack.c.l.b16 %v215
  %v545 = vunpack.c.h.b16 %v215
  %v546 = vunpack.c.l.b16 %v216
  %v547 = vunpack.c.h.b16 %v216
  %v548 = vunpack.c.l.b16 %v217
  %v549 = vunpack.c.l.b16 %v218
  %v550 = vunpack.c.h.b16 %v218
  %v551 = vunpack.c.l.b16 %v219
  %v552 = vunpack.c.h.b16 %v219
  %v553 = vunpack.c.l.b16 %v220
  %v554 = vunpack.c.l.b16 %v221
  %v555 = vunpack.c.h.b16 %v221
  %v556 = vunpack.c.l.b16 %v222
  %v557 = vunpack.c.h.b16 %v222
  %v558 = vunpack.c.l.b16 %v223
  %v559 = vunpack.c.l.b16 %v224
  %v560 = vunpack.c.h.b16 %v224
  %v561 = vunpack.c.l.b16 %v225
  %v562 = vunpack.c.h.b16 %v225
  %v563 = vunpack.c.l.b16 %v226
  %v564 = vunpack.c.l.b16 %v227
  %v565 = vunpack.c.h.b16 %v227
  %v566 = vunpack.c.l.b16 %v228
  %v567 = vunpack.c.h.b16 %v228
  %v568 = vunpack.c.l.b16 %v229
  %v569 = vunpack.c.l.b16 %v230
  %v570 = vunpack.c.h.b16 %v230
  %v571 = vunpack.c.l.b16 %v231
  %v572 = vunpack.c.h.b16 %v231
  %v573 = vunpack.c.l.b16 %v232
  %v574 = vunpack.c.l.b16 %v233
  %v575 = vunpack.c.h.b16 %v233
  %v576 = vunpack.c.l.b16 %v234
  %v577 = vunpack.c.h.b16 %v234
  %v578 = vunpack.c.l.b16 %v235
  %v579 = vunpack.c.l.b16 %v236
  %v580 = vunpack.c.h.b16 %v236
  %v581 = vunpack.c.l.b16 %v237
  %v582 = vunpack.c.h.b16 %v237
  %v583 = vunpack.c.l.b16 %v238
  %v584 = vunpack.c.l.b16 %v239
  %v585 = vunpack.c.h.b16 %v239
  %v586 = vunpack.c.l.b16 %v240
  %v587 = vunpack.c.h.b16 %v240
  %v588 = vunpack.c.l.b16 %v241
  %v589 = vunpack.c.l.b16 %v242
  %v590 = vunpack.c.h.b16 %v242
  %v591 = vunpack.c.l.b16 %v243
  %v592 = vunpack.c.h.b16 %v243
  %v593 = vunpack.c.l.b16 %v244
  %v594 = vunpack.c.l.b16 %v245
  %v595 = vunpack.c.h.b16 %v245
  %v596 = vunpack.c.l.b16 %v246
  %v597 = vunpack.c.h.b16 %v246
  %v598 = vunpack.c.l.b16 %v247
  %v599 = vunpack.c.l.b16 %v248
  %v600 = vunpack.c.h.b16 %v248
  %v601 = vunpack.c.l.b16 %v249
  %v602 = vunpack.c.h.b16 %v249
  %v603 = vunpack.c.l.b16 %v250
  %v604 = vunpack.c.l.b16 %v251
  %v605 = vunpack.c.h.b16 %v251
  %v606 = vunpack.c.l.b16 %v252
  %v607 = vunpack.c.h.b16 %v252
  %v608 = vunpack.c.l.b16 %v253
  %v609 = vunpack.c.l.b16 %v254
  %v610 = vunpack.c.h.b16 %v254
  %v611 = vunpack.c.l.b16 %v255
  %v612 = vunpack.c.h.b16 %v255
  %v613 = vunpack.c.l.b16 %v256
  %v614 = vunpack.c.l.b16 %v257
  %v615 = vunpack.c.h.b16 %v257
  %v616 = vunpack.c.l.b16 %v258
  %v617 = vunpack.c.h.b16 %v258
  %v618 = vunpack.c.l.b16 %v259
  %v619 = vunpack.c.l.b16 %v260
  %v620 = vunpack.c.h.b16 %v260
  %v621 = vunpack.c.l.b16 %v261
  %v622 = vunpack.c.h.b16 %v261
  %v623 = vunpack.c.l.b16 %v262
  %v624 = vunpack.c.l.b16 %v263
  %v625 = vunpack.c.h.b16 %v263
  %v626 = vunpack.c.l.b16 %v264
  %v627 = vunpack.c.h.b16 %v264
  %v628 = vunpack.c.l.b16 %v265
  %v629 = vunpack.c.l.b16 %v266
  %v630 = vunpack.c.h.b16 %v266
  %v631 = vunpack.c.l.b16 %v267
  %v632 = vunpack.c.h.b16 %v267
  %v633 = vunpack.c.l.b16 %v268
  %v634 = vunpack.c.l.b16 %v269
  %v635 = vunpack.c.h.b16 %v269
  %v636 = vunpack.c.l.b16 %v270
  %v637 = vunpack.c.h.b16 %v270
  %v638 = vunpack.c.l.b16 %v271
  %v639 = vunpack.c.l.b16 %v272
  %v640 = vunpack.c.h.b16 %v272
  %v641 = vunpack.c.l.b16 %v273
  %v642 = vunpack.c.h.b16 %v273
  %v643 = vunpack.c.l.b16 %v274
  %v644 = vunpack.c.l.b16 %v275
  %v645 = vunpack.c.h.b16 %v275
  %v646 = vunpack.c.l.b16 %v276
  %v647 = vunpack.c.h.b16 %v276
  %v648 = vunpack.c.l.b16 %v277
  %v649 = vunpack.c.l.b16 %v278
  %v650 = vunpack.c.h.b16 %v278
  %v651 = vunpack.c.l.b16 %v279
  %v652 = vunpack.c.h.b16 %v279
  %v653 = vunpack.c.l.b16 %v280
  %v654 = vunpack.c.l.b16 %v281
  %v655 = vunpack.c.h.b16 %v281
  %v656 = vunpack.c.l.b16 %v282
  %v657 = vunpack.c.h.b16 %v282
  %v658 = vunpack.c.l.b16 %v283
  %v659 = vunpack.c.l.b16 %v284
  %v660 = vunpack.c.h.b16 %v284
  %v661 = vunpack.c.l.b16 %v285
  %v662 = vunpack.c.h.b16 %v285
  %v663 = vunpack.c.l.b16 %v286
  %v664 = vunpack.c.l.b16 %v287
  %v665 = vunpack.c.h.b16 %v287
  %v666 = vunpack.c.l.b16 %v288
  %v667 = vunpack.c.h.b16 %v288
  %v668 = vunpack.c.l.b16 %v289
  %v669 = vunpack.c.l.b16 %v290
  %v670 = vunpack.c.h.b16 %v290
  %v671 = vunpack.c.l.b16 %v291
  %v672 = vunpack.c.h.b16 %v291
  %v673 = vunpack.c.l.b16 %v292
  %v674 = vunpack.c.l.b16 %v293
  %v675 = vunpack.c.h.b16 %v293
  %v676 = vunpack.c.l.b16 %v294
  %v677 = vunpack.c.h.b16 %v294
  %v678 = vunpack.c.l.b16 %v295
  %v679 = vunpack.c.l.b16 %v296
  %v680 = vunpack.c.h.b16 %v296
  %v681 = vunpack.c.l.b16 %v297
  %v682 = vunpack.c.h.b16 %v297
  %v683 = vunpack.c.l.b16 %v298
  %v684 = vunpack.c.l.b16 %v299
  %v685 = vunpack.c.h.b16 %v299
  %v686 = vunpack.c.l.b16 %v300
  %v687 = vunpack.c.h.b16 %v300
  %v688 = vunpack.c.l.b16 %v301
  %v689 = vunpack.c.l.b16 %v302
  %v690 = vunpack.c.h.b16 %v302
  %v691 = vunpack.c.l.b16 %v303
  %v692 = vunpack.c.h.b16 %v303
  %v693 = vunpack.c.l.b16 %v304
  %v694 = vunpack.c.l.b16 %v305
  %v695 = vunpack.c.h.b16 %v305
  %v696 = vunpack.c.l.b16 %v306
  %v697 = vunpack.c.h.b16 %v306
  %v698 = vunpack.c.l.b16 %v307
  %v699 = vunpack.c.l.b16 %v308
  %v700 = vunpack.c.h.b16 %v308
  %v701 = vunpack.c.l.b16 %v309
  %v702 = vunpack.c.h.b16 %v309
  %v703 = vunpack.c.l.b16 %v310
  %v704 = vunpack.c.l.b16 %v311
  %v705 = vunpack.c.h.b16 %v311
  %v706 = vunpack.c.l.b16 %v312
  %v707 = vunpack.c.h.b16 %v312
  %v708 = vunpack.c.l.b16 %v313
  %v709 = vunpack.c.l.b16 %v314
  %v710 = vunpack.c.h.b16 %v314
  %v711 = vunpack.c.l.b16 %v315
  %v712 = vunpack.c.h.b16 %v315
  %v713 = vunpack.c.l.b16 %v316
  %v714 = vunpack.c.l.b16 %v317
  %v715 = vunpack.c.h.b16 %v317
  %v716 = vunpack.c.l.b16 %v318
  %v717 = vunpack.c.h.b16 %v318
  %v718 = vunpack.c.l.b16 %v319
  %v719 = vunpack.c.l.b16 %v320
  %v720 = vunpack.c.h.b16 %v320
  %v721 = vunpack.c.l.b16 %v321
  %v722 = vunpack.c.h.b16 %v321
  %v723 = vunpack.c.l.b16 %v322
  %v724 = vunpack.c.l.b16 %v323
  %v725 = vunpack.c.h.b16 %v323
  %v726 = vunpack.c.l.b16 %v324
  %v727 = vunpack.c.h.b16 %v324
  %v728 = vunpack.c.l.b16 %v325
  %v729 = vunpack.c.l.b16 %v326
  %v730 = vunpack.c.h.b16 %v326
  %v731 = vunpack.c.l.b16 %v327
  %v732 = vunpack.c.h.b16 %v327
  %v733 = vunpack.c.l.b16 %v328
  %v734 = vunpack.c.l.b16 %v329
  %v735 = vunpack.c.h.b16 %v329
  %v736 = vunpack.c.l.b16 %v330
  %v737 = vunpack.c.h.b16 %v330
  %v738 = vunpack.c.l.b16 %v331
  %v739 = vunpack.c.l.b16 %v332
  %v740 = vunpack.c.h.b16 %v332
  %v741 = vunpack.c.l.b16 %v333
  %v742 = vunpack.c.h.b16 %v333
  %v743 = vunpack.c.l.b16 %v334
  %v744 = vunpack.c.l.b16 %v335
  %v745 = vunpack.c.h.b16 %v335
  %v746 = vunpack.c.l.b16 %v336
  %v747 = vunpack.c.h.b16 %v336
  %v748 = vunpack.c.l.b16 %v337
  %v749 = vpack.c.b16 %v514, %v509
  %v750 = vpack.c.b16 %v515, %v510
  %v751 = vpack.c.b16 %v516, %v511
  %v752 = vpack.c.b16 %v517, %v512
  %v753 = vpack.c.b16 %v518, %v513
  %v754 = vpack.c.b16 %v524, %v519
  %v755 = vpack.c.b16 %v525, %v520
  %v756 = vpack.c.b16 %v526, %v521
  %v757 = vpack.c.b16 %v527, %v522
  %v758 = vpack.c.b16 %v528, %v523
  %v759 = vpack.c.b16 %v534, %v529
  %v760 = vpack.c.b16 %v535, %v530
  %v761 = vpack.c.b16 %v536, %v531
  %v762 = vpack.c.b16 %v537, %v532
  %v763 = vpack.c.b16 %v538, %v533
  %v764 = vpack.c.b16 %v544, %v539
  %v765 = vpack.c.b16 %v545, %v540
  %v766 = vpack.c.b16 %v546, %v541
  %v767 = vpack.c.b16 %v547, %v542
  %v768 = vpack.c.b16 %v548, %v543
  %v769 = vpack.c.b16 %v554, %v549
  %v770 = vpack.c.b16 %v555, %v550
  %v771 = vpack.c.b16 %v556, %v551
  %v772 = vpack.c.b16 %v557, %v552
  %v773 = vpack.c.b16 %v558, %v553
  %v774 = vpack.c.b16 %v564, %v559
  %v775 = vpack.c.b16 %v565, %v560
  %v776 = vpack.c.b16 %v566, %v561
  %v777 = vpack.c.b16 %v567, %v562
  %v778 = vpack.c.b16 %v568, %v563
  %v779 = vpack.c.b16 %v574, %v569
  %v780 = vpack.c.b16 %v575, %v570
  %v781 = vpack.c.b16 %v576, %v571
  %v782 = vpack.c.b16 %v577, %v572
  %v783 = vpack.c.b16 %v578, %v573
  %v784 = vpack.c.b16 %v584, %v579
  %v785 = vpack.c.b16 %v585, %v580
  %v786 = vpack.c.b16 %v586, %v581
  %v787 = vpack.c.b16 %v587, %v582
  %v788 = vpack.c.b16 %v588, %v583
  %v789 = vpack.c.b16 %v594, %v589
  %v790 = vpack.c.b16 %v595, %v590
  %v791 = vpack.c.b16 %v596, %v591
  %v792 = vpack.c.b16 %v597, %v592
  %v793 = vpack.c.b16 %v598, %v593
  %v794 = vpack.c.b16 %v604, %v599
  %v795 = vpack.c.b16 %v605, %v600
  %v796 = vpack.c.b16 %v606, %v601
  %v797 = vpack.c.b16 %v607, %v602
  %v798 = vpack.c.b16 %v608, %v603
  %v799 = vpack.c.b16 %v614, %v609
  %v800 = vpack.c.b16 %v615, %v610
  %v801 = vpack.c.b16 %v616, %v611
  %v802 = vpack.c.b16 %v617, %v612
  %v803 = vpack.c.b16 %v618, %v613
  %v804 = vpack.c.b16 %v624, %v619
  %v805 = vpack.c.b16 %v625, %v620
  %v806 = vpack.c.b16 %v626, %v621
  %v807 = vpack.c.b16 %v627, %v622
  %v808 = vpack.c.b16 %v628, %v623
  %v809 = vpack.c.b16 %v634, %v629
  %v810 = vpack.c.b16 %v635, %v630
  %v811 = vpack.c.b16 %v636, %v631
  %v812 = vpack.c.b16 %v637, %v632
  %v813 = vpack.c.b16 %v638, %v633
  %v814 = vpack.c.b16 %v644, %v639
  %v815 = vpack.c.b16 %v645, %v640
  %v816 = vpack.c.b16 %v646, %v641
  %v817 = vpack.c.b16 %v647, %v642
  %v818 = vpack.c.b16 %v648, %v643
  %v819 = vpack.c.b16 %v654, %v649
  %v820 = vpack.c.b16 %v655, %v650
  %v821 = vpack.c.b16 %v656, %v651
  %v822 = vpack.c.b16 %v657, %v652
  %v823 = vpack.c.b16 %v658, %v653
  %v824 = vpack.c.b16 %v664, %v659
  %v825 = vpack.c.b16 %v665, %v660
  %v826 = vpack.c.b16 %v666, %v661
  %v827 = vpack.c.b16 %v667, %v662
  %v828 = vpack.c.b16 %v668, %v663
  %v829 = vpack.c.b16 %v674, %v669
  %v830 = vpack.c.b16 %v675, %v670
  %v831 = vpack.c.b16 %v676, %v671
  %v832 = vpack.c.b16 %v677, %v672
  %v833 = vpack.c.b16 %v678, %v673
  %v834 = vpack.c.b16 %v684, %v679
  %v835 = vpack.c.b16 %v685, %v680
  %v836 = vpack.c.b16 %v686, %v681
  %v837 = vpack.c.b16 %v687, %v682
  %v838 = vpack.c.b16 %v688, %v683
  %v839 = vpack.c.b16 %v694, %v689
  %v840 = vpack.c.b16 %v695, %v690
  %v841 = vpack.c.b16 %v696, %v691
  %v842 = vpack.c.b16 %v697, %v692
  %v843 = vpack.c.b16 %v698, %v693
  %v844 = vpack.c.b16 %v704, %v699
  %v845 = vpack.c.b16 %v705, %v700
  %v846 = vpack.c.b16 %v706, %v701
  %v847 = vpack.c.b16 %v707, %v702
  %v848 = vpack.c.b16 %v708, %v703
  %v849 = vpack.c.b16 %v714, %v709
  %v850 = vpack.c.b16 %v715, %v710
  %v851 = vpack.c.b16 %v716, %v711
  %v852 = vpack.c.b16 %v717, %v712
  %v853 = vpack.c.b16 %v718, %v713
  %v854 = vpack.c.b16 %v724, %v719
  %v855 = vpack.c.b16 %v725, %v720
  %v856 = vpack.c.b16 %v726, %v721
  %v857 = vpack.c.b16 %v727, %v722
  %v858 = vpack.c.b16 %v728, %v723
  %v859 = vpack.c.b16 %v734, %v729
  %v860 = vpack.c.b16 %v735, %v730
  %v861 = vpack.c.b16 %v736, %v731
  %v862 = vpack.c.b16 %v737, %v732
  %v863 = vpack.c.b16 %v738, %v733
  %v864 = vpack.c.b16 %v744, %v739
  %v865 = vpack.c.b16 %v745, %v740
  %v866 = vpack.c.b16 %v746, %v741
  %v867 = vpack.c.b16 %v747, %v742
  %v868 = vpack.c.b16 %v748, %v743
  %989 = vmatprep.subr.bf16.mxu0 %v750
  %990 = vmatpush1.bf16.msra.mxu0 %v749
  %991 = vmatprep.subr.bf16.mxu0 %v755
  %992 = vmatpush1.bf16.msra.mxu0 %v754
  %993 = vmatprep.subr.bf16.mxu0 %v760
  %994 = vmatpush1.bf16.msra.mxu0 %v759
  %995 = vmatprep.subr.bf16.mxu0 %v765
  %996 = vmatpush1.bf16.msra.mxu0 %v764
  %997 = vmatprep.subr.bf16.mxu0 %v770
  %998 = vmatpush1.bf16.msra.mxu0 %v769
  %999 = vmatprep.subr.bf16.mxu0 %v775
  %1000 = vmatpush1.bf16.msra.mxu0 %v774
  %1001 = vmatprep.subr.bf16.mxu0 %v780
  %1002 = vmatpush1.bf16.msra.mxu0 %v779
  %1003 = vmatprep.subr.bf16.mxu0 %v785
  %1004 = vmatpush1.bf16.msra.mxu0 %v784
  %1005 = vmatprep.subr.bf16.mxu0 %v790
  %1006 = vmatpush1.bf16.msra.mxu0 %v789
  %1007 = vmatprep.subr.bf16.mxu0 %v795
  %1008 = vmatpush1.bf16.msra.mxu0 %v794
  %1009 = vmatprep.subr.bf16.mxu0 %v800
  %1010 = vmatpush1.bf16.msra.mxu0 %v799
  %1011 = vmatprep.subr.bf16.mxu0 %v805
  %1012 = vmatpush1.bf16.msra.mxu0 %v804
  %1013 = vmatprep.subr.bf16.mxu0 %v810
  %1014 = vmatpush1.bf16.msra.mxu0 %v809
  %1015 = vmatprep.subr.bf16.mxu0 %v815
  %1016 = vmatpush1.bf16.msra.mxu0 %v814
  %1017 = vmatprep.subr.bf16.mxu0 %v820
  %1018 = vmatpush1.bf16.msra.mxu0 %v819
  %1019 = vmatprep.subr.bf16.mxu0 %v825
  %1020 = vmatpush1.bf16.msra.mxu0 %v824
  %1021 = vmatprep.mubr.bf16.mxu0 %v192
  %1022 = vmatmul.mubr.bf16.gmra.mrb[0].mxu0 %v191
  %v1023 = vpop.f32.mrb[0].mxu0
  %v1024 = vadd.f32 %v343, %v1023
  %v1025 = vpop.f32.mrb[0].mxu0
  %v1026 = vadd.f32 %v347, %v1025
  %v1027 = vpop.f32.mrb[0].mxu0
  %v1028 = vadd.f32 %v343, %v1027
  %v1029 = vpop.f32.mrb[0].mxu0
  %v1030 = vadd.f32 %v347, %v1029
  %1031 = vdwg.mxu0
  %1032 = vmatprep.subr.bf16.mxu0 %v830
  %1033 = vmatpush1.bf16.msra.mxu0 %v829
  %1034 = vmatprep.subr.bf16.mxu0 %v835
  %1035 = vmatpush1.bf16.msra.mxu0 %v834
  %1036 = vmatprep.subr.bf16.mxu0 %v840
  %1037 = vmatpush1.bf16.msra.mxu0 %v839
  %1038 = vmatprep.subr.bf16.mxu0 %v845
  %1039 = vmatpush1.bf16.msra.mxu0 %v844
  %1040 = vmatprep.subr.bf16.mxu0 %v850
  %1041 = vmatpush1.bf16.msra.mxu0 %v849
  %1042 = vmatprep.subr.bf16.mxu0 %v855
  %1043 = vmatpush1.bf16.msra.mxu0 %v854
  %1044 = vmatprep.subr.bf16.mxu0 %v860
  %1045 = vmatpush1.bf16.msra.mxu0 %v859
  %1046 = vmatprep.subr.bf16.mxu0 %v865
  %1047 = vmatpush1.bf16.msra.mxu0 %v864
  %1048 = vmatprep.subr.bf16.mxu0 0
  %1049 = vmatpush1.bf16.msra.mxu0 0
  %1050 = vmatprep.subr.bf16.mxu0 0
  %1051 = vmatpush1.bf16.msra.mxu0 0
  %1052 = vmatprep.subr.bf16.mxu0 0
  %1053 = vmatpush1.bf16.msra.mxu0 0
  %1054 = vmatprep.subr.bf16.mxu0 0
  %1055 = vmatpush1.bf16.msra.mxu0 0
  %1056 = vmatprep.subr.bf16.mxu0 0
  %1057 = vmatpush1.bf16.msra.mxu0 0
  %1058 = vmatprep.subr.bf16.mxu0 0
  %1059 = vmatpush1.bf16.msra.mxu0 0
  %1060 = vmatprep.subr.bf16.mxu0 0
  %1061 = vmatpush1.bf16.msra.mxu0 0
  %1062 = vmatprep.subr.bf16.mxu0 0
  %1063 = vmatpush1.bf16.msra.mxu0 0
  %1064 = vmatprep.mubr.bf16.mxu0 0
  %1065 = vmatmul.mubr.bf16.gmra.mrb[0].mxu0 %v193
  %v1066 = vpop.f32.mrb[0].mxu0
  %v1067 = vadd.f32 %v1024, %v1066
  %v1068 = vpop.f32.mrb[0].mxu0
  %v1069 = vadd.f32 %v1026, %v1068
  %v1070 = vpop.f32.mrb[0].mxu0
  %v1071 = vadd.f32 %v1028, %v1070
  %v1072 = vpop.f32.mrb[0].mxu0
  %v1073 = vadd.f32 %v1030, %v1072
  %1074 = vdwg.mxu0
  %1075 = vmatprep.subr.bf16.mxu0 %v752
  %1076 = vmatpush1.bf16.msra.mxu0 %v751
  %1077 = vmatprep.subr.bf16.mxu0 %v757
  %1078 = vmatpush1.bf16.msra.mxu0 %v756
  %1079 = vmatprep.subr.bf16.mxu0 %v762
  %1080 = vmatpush1.bf16.msra.mxu0 %v761
  %1081 = vmatprep.subr.bf16.mxu0 %v767
  %1082 = vmatpush1.bf16.msra.mxu0 %v766
  %1083 = vmatprep.subr.bf16.mxu0 %v772
  %1084 = vmatpush1.bf16.msra.mxu0 %v771
  %1085 = vmatprep.subr.bf16.mxu0 %v777
  %1086 = vmatpush1.bf16.msra.mxu0 %v776
  %1087 = vmatprep.subr.bf16.mxu0 %v782
  %1088 = vmatpush1.bf16.msra.mxu0 %v781
  %1089 = vmatprep.subr.bf16.mxu0 %v787
  %1090 = vmatpush1.bf16.msra.mxu0 %v786
  %1091 = vmatprep.subr.bf16.mxu0 %v792
  %1092 = vmatpush1.bf16.msra.mxu0 %v791
  %1093 = vmatprep.subr.bf16.mxu0 %v797
  %1094 = vmatpush1.bf16.msra.mxu0 %v796
  %1095 = vmatprep.subr.bf16.mxu0 %v802
  %1096 = vmatpush1.bf16.msra.mxu0 %v801
  %1097 = vmatprep.subr.bf16.mxu0 %v807
  %1098 = vmatpush1.bf16.msra.mxu0 %v806
  %1099 = vmatprep.subr.bf16.mxu0 %v812
  %1100 = vmatpush1.bf16.msra.mxu0 %v811
  %1101 = vmatprep.subr.bf16.mxu0 %v817
  %1102 = vmatpush1.bf16.msra.mxu0 %v816
  %1103 = vmatprep.subr.bf16.mxu0 %v822
  %1104 = vmatpush1.bf16.msra.mxu0 %v821
  %1105 = vmatprep.subr.bf16.mxu0 %v827
  %1106 = vmatpush1.bf16.msra.mxu0 %v826
  %1107 = vmatprep.mubr.bf16.mxu0 %v192
  %1108 = vmatmul.mubr.bf16.gmra.mrb[0].mxu0 %v191
  %v1109 = vpop.f32.mrb[0].mxu0
  %v1110 = vadd.f32 %v351, %v1109
  %v1111 = vpop.f32.mrb[0].mxu0
  %v1112 = vadd.f32 %v355, %v1111
  %v1113 = vpop.f32.mrb[0].mxu0
  %v1114 = vadd.f32 %v351, %v1113
  %v1115 = vpop.f32.mrb[0].mxu0
  %v1116 = vadd.f32 %v355, %v1115
  %1117 = vdwg.mxu0
  %1118 = vmatprep.subr.bf16.mxu0 %v832
  %1119 = vmatpush1.bf16.msra.mxu0 %v831
  %1120 = vmatprep.subr.bf16.mxu0 %v837
  %1121 = vmatpush1.bf16.msra.mxu0 %v836
  %1122 = vmatprep.subr.bf16.mxu0 %v842
  %1123 = vmatpush1.bf16.msra.mxu0 %v841
  %1124 = vmatprep.subr.bf16.mxu0 %v847
  %1125 = vmatpush1.bf16.msra.mxu0 %v846
  %1126 = vmatprep.subr.bf16.mxu0 %v852
  %1127 = vmatpush1.bf16.msra.mxu0 %v851
  %1128 = vmatprep.subr.bf16.mxu0 %v857
  %1129 = vmatpush1.bf16.msra.mxu0 %v856
  %1130 = vmatprep.subr.bf16.mxu0 %v862
  %1131 = vmatpush1.bf16.msra.mxu0 %v861
  %1132 = vmatprep.subr.bf16.mxu0 %v867
  %1133 = vmatpush1.bf16.msra.mxu0 %v866
  %1134 = vmatprep.subr.bf16.mxu0 0
  %1135 = vmatpush1.bf16.msra.mxu0 0
  %1136 = vmatprep.subr.bf16.mxu0 0
  %1137 = vmatpush1.bf16.msra.mxu0 0
  %1138 = vmatprep.subr.bf16.mxu0 0
  %1139 = vmatpush1.bf16.msra.mxu0 0
  %1140 = vmatprep.subr.bf16.mxu0 0
  %1141 = vmatpush1.bf16.msra.mxu0 0
  %1142 = vmatprep.subr.bf16.mxu0 0
  %1143 = vmatpush1.bf16.msra.mxu0 0
  %1144 = vmatprep.subr.bf16.mxu0 0
  %1145 = vmatpush1.bf16.msra.mxu0 0
  %1146 = vmatprep.subr.bf16.mxu0 0
  %1147 = vmatpush1.bf16.msra.mxu0 0
  %1148 = vmatprep.subr.bf16.mxu0 0
  %1149 = vmatpush1.bf16.msra.mxu0 0
  %1150 = vmatprep.mubr.bf16.mxu0 0
  %1151 = vmatmul.mubr.bf16.gmra.mrb[0].mxu0 %v193
  %v1152 = vpop.f32.mrb[0].mxu0
  %v1153 = vadd.f32 %v1110, %v1152
  %v1154 = vpop.f32.mrb[0].mxu0
  %v1155 = vadd.f32 %v1112, %v1154
  %v1156 = vpop.f32.mrb[0].mxu0
  %v1157 = vadd.f32 %v1114, %v1156
  %v1158 = vpop.f32.mrb[0].mxu0
  %v1159 = vadd.f32 %v1116, %v1158
  %1160 = vdwg.mxu0
  %1161 = vmatprep.subr.bf16.mxu0 0
  %1162 = vmatpush1.bf16.msra.mxu0 %v753
  %1163 = vmatprep.subr.bf16.mxu0 0
  %1164 = vmatpush1.bf16.msra.mxu0 %v758
  %1165 = vmatprep.subr.bf16.mxu0 0
  %1166 = vmatpush1.bf16.msra.mxu0 %v763
  %1167 = vmatprep.subr.bf16.mxu0 0
  %1168 = vmatpush1.bf16.msra.mxu0 %v768
  %1169 = vmatprep.subr.bf16.mxu0 0
  %1170 = vmatpush1.bf16.msra.mxu0 %v773
  %1171 = vmatprep.subr.bf16.mxu0 0
  %1172 = vmatpush1.bf16.msra.mxu0 %v778
  %1173 = vmatprep.subr.bf16.mxu0 0
  %1174 = vmatpush1.bf16.msra.mxu0 %v783
  %1175 = vmatprep.subr.bf16.mxu0 0
  %1176 = vmatpush1.bf16.msra.mxu0 %v788
  %1177 = vmatprep.subr.bf16.mxu0 0
  %1178 = vmatpush1.bf16.msra.mxu0 %v793
  %1179 = vmatprep.subr.bf16.mxu0 0
  %1180 = vmatpush1.bf16.msra.mxu0 %v798
  %1181 = vmatprep.subr.bf16.mxu0 0
  %1182 = vmatpush1.bf16.msra.mxu0 %v803
  %1183 = vmatprep.subr.bf16.mxu0 0
  %1184 = vmatpush1.bf16.msra.mxu0 %v808
  %1185 = vmatprep.subr.bf16.mxu0 0
  %1186 = vmatpush1.bf16.msra.mxu0 %v813
  %1187 = vmatprep.subr.bf16.mxu0 0
  %1188 = vmatpush1.bf16.msra.mxu0 %v818
  %1189 = vmatprep.subr.bf16.mxu0 0
  %1190 = vmatpush1.bf16.msra.mxu0 %v823
  %1191 = vmatprep.subr.bf16.mxu0 0
  %1192 = vmatpush1.bf16.msra.mxu0 %v828
  %1193 = vmatprep.mubr.bf16.mxu0 %v192
  %1194 = vmatmul.mubr.bf16.gmra.mrb[0].mxu0 %v191
  %v1195 = vpop.f32.mrb[0].mxu0
  %v1196 = vadd.f32 %v359, %v1195
  %v1197 = vpop.f32.mrb[0].mxu0
  %v1198 = vpop.f32.mrb[0].mxu0
  %v1199 = vadd.f32 %v359, %v1198
  %v1200 = vpop.f32.mrb[0].mxu0
  %1201 = vdwg.mxu0
  %1202 = vmatprep.subr.bf16.mxu0 0
  %1203 = vmatpush1.bf16.msra.mxu0 %v833
  %1204 = vmatprep.subr.bf16.mxu0 0
  %1205 = vmatpush1.bf16.msra.mxu0 %v838
  %1206 = vmatprep.subr.bf16.mxu0 0
  %1207 = vmatpush1.bf16.msra.mxu0 %v843
  %1208 = vmatprep.subr.bf16.mxu0 0
  %1209 = vmatpush1.bf16.msra.mxu0 %v848
  %1210 = vmatprep.subr.bf16.mxu0 0
  %1211 = vmatpush1.bf16.msra.mxu0 %v853
  %1212 = vmatprep.subr.bf16.mxu0 0
  %1213 = vmatpush1.bf16.msra.mxu0 %v858
  %1214 = vmatprep.subr.bf16.mxu0 0
  %1215 = vmatpush1.bf16.msra.mxu0 %v863
  %1216 = vmatprep.subr.bf16.mxu0 0
  %1217 = vmatpush1.bf16.msra.mxu0 %v868
  %1218 = vmatprep.subr.bf16.mxu0 0
  %1219 = vmatpush1.bf16.msra.mxu0 0
  %1220 = vmatprep.subr.bf16.mxu0 0
  %1221 = vmatpush1.bf16.msra.mxu0 0
  %1222 = vmatprep.subr.bf16.mxu0 0
  %1223 = vmatpush1.bf16.msra.mxu0 0
  %1224 = vmatprep.subr.bf16.mxu0 0
  %1225 = vmatpush1.bf16.msra.mxu0 0
  %1226 = vmatprep.subr.bf16.mxu0 0
  %1227 = vmatpush1.bf16.msra.mxu0 0
  %1228 = vmatprep.subr.bf16.mxu0 0
  %1229 = vmatpush1.bf16.msra.mxu0 0
  %1230 = vmatprep.subr.bf16.mxu0 0
  %1231 = vmatpush1.bf16.msra.mxu0 0
  %1232 = vmatprep.subr.bf16.mxu0 0
  %1233 = vmatpush1.bf16.msra.mxu0 0
  %1234 = vmatprep.mubr.bf16.mxu0 0
  %1235 = vmatmul.mubr.bf16.gmra.mrb[0].mxu0 %v193
  %v1236 = vpop.f32.mrb[0].mxu0
  %v1237 = vadd.f32 %v1196, %v1236
  %v1238 = vpop.f32.mrb[0].mxu0
  %v1239 = vpop.f32.mrb[0].mxu0
  %v1240 = vadd.f32 %v1199, %v1239
  %v1241 = vpop.f32.mrb[0].mxu0
  %1242 = vdwg.mxu0
  %v1243 = vmax.f32 %v1067, 0.0
  %v1244 = vmax.f32 %v1069, 0.0
  %v1245 = vmax.f32 %v1153, 0.0
  %v1246 = vmax.f32 %v1155, 0.0
  %v1247 = vmax.f32 %v1237, 0.0
  %v1248 = vmax.f32 %v1071, 0.0
  %v1249 = vmax.f32 %v1073, 0.0
  %v1250 = vmax.f32 %v1157, 0.0
  %v1251 = vmax.f32 %v1159, 0.0
  %v1252 = vmax.f32 %v1240, 0.0
  %v1253 = vpack.c.bf16 %v1248, %v1243
  %v1254 = vpack.c.bf16 %v1249, %v1244
  %v1255 = vpack.c.bf16 %v1250, %v1245
  %v1256 = vpack.c.bf16 %v1251, %v1246
  %v1257 = vpack.c.bf16 %v1252, %v1247
  %v1258 = vld [vmem:[%s5] sm:$0xf]
  %v1259 = vld [vmem:[%s5 + $0x4] sm:$0xf]
  %v1260 = vld [vmem:[%s5 + $0x8] sm:$0xf]
  %v1261 = vld [vmem:[%s5 + $0xc] sm:$0xf]
  %v1262 = vld [vmem:[%s5 + $0x10] sm:$0xf]
  %v1263 = vld [vmem:[%s5 + $0x14] sm:$0xf]
  %v1264 = vld [vmem:[%s5 + $0x18] sm:$0xf]
  %v1265 = vld [vmem:[%s5 + $0x1c] sm:$0xf]
  %v1266 = vld [vmem:[%s5 + $0x20] sm:$0xf]
  %v1267 = vld [vmem:[%s5 + $0x24] sm:$0xf]
  %v1268 = vld [vmem:[%s5 + $0x28] sm:$0xf]
  %v1269 = vld [vmem:[%s5 + $0x2c] sm:$0xf]
  %v1270 = vld [vmem:[%s5 + $0x30] sm:$0xf]
  %v1271 = vld [vmem:[%s5 + $0x34] sm:$0xf]
  %v1272 = vld [vmem:[%s5 + $0x38] sm:$0xf]
  %v1273 = vld [vmem:[%s5 + $0x3c] sm:$0xf]
  %v1274 = vld [vmem:[%s5 + $0x40] sm:$0xf]
  %v1275 = vld [vmem:[%s5 + $0x44] sm:$0xf]
  %v1276 = vld [vmem:[%s5 + $0x48] sm:$0xf]
  %v1277 = vld [vmem:[%s5 + $0x4c] sm:$0xf]
  %v1278 = vld [vmem:[%s5 + $0x50] sm:$0xf]
  %v1279 = vld [vmem:[%s5 + $0x54] sm:$0xf]
  %v1280 = vld [vmem:[%s5 + $0x58] sm:$0xf]
  %v1281 = vld [vmem:[%s5 + $0x5c] sm:$0xf]
  %v1282 = vld [vmem:[%s5 + $0x60] sm:$0xf]
  %v1283 = vld [vmem:[%s5 + $0x64] sm:$0xf]
  %v1284 = vld [vmem:[%s5 + $0x68] sm:$0xf]
  %v1285 = vld [vmem:[%s5 + $0x6c] sm:$0xf]
  %v1286 = vld [vmem:[%s5 + $0x70] sm:$0xf]
  %v1287 = vld [vmem:[%s5 + $0x74] sm:$0xf]
  %v1288 = vld [vmem:[%s5 + $0x78] sm:$0xf]
  %v1289 = vld [vmem:[%s5 + $0x7c] sm:$0xf]
  %v1290 = vld [vmem:[%s5 + $0x80] sm:$0xf]
  %v1291 = vld [vmem:[%s5 + $0x84] sm:$0xf]
  %v1292 = vld [vmem:[%s5 + $0x88] sm:$0xf]
  %v1293 = vld [vmem:[%s5 + $0x8c] sm:$0xf]
  %v1294 = vld [vmem:[%s5 + $0x90] sm:$0xf]
  %v1295 = vld [vmem:[%s5 + $0x94] sm:$0xf]
  %v1296 = vld [vmem:[%s5 + $0x98] sm:$0xf]
  %v1297 = vld [vmem:[%s5 + $0x9c] sm:$0xf]
  %v1298 = vld [vmem:[%s5 + $0xa0] sm:$0xf]
  %v1299 = vld [vmem:[%s5 + $0xa4] sm:$0xf]
  %v1300 = vld [vmem:[%s5 + $0xa8] sm:$0xf]
  %v1301 = vld [vmem:[%s5 + $0xac] sm:$0xf]
  %v1302 = vld [vmem:[%s5 + $0xb0] sm:$0xf]
  %v1303 = vld [vmem:[%s5 + $0xb4] sm:$0xf]
  %v1304 = vld [vmem:[%s5 + $0xb8] sm:$0xf]
  %v1305 = vld [vmem:[%s5 + $0xbc] sm:$0xf]
  %v1306 = vld [vmem:[%s5 + $0xc0] sm:$0xf]
  %v1307 = vld [vmem:[%s5 + $0xc4] sm:$0xf]
  %v1308 = vld [vmem:[%s5 + $0xc8] sm:$0xf]
  %v1309 = vld [vmem:[%s5 + $0xcc] sm:$0xf]
  %v1310 = vld [vmem:[%s5 + $0xd0] sm:$0xf]
  %v1311 = vld [vmem:[%s5 + $0xd4] sm:$0xf]
  %v1312 = vld [vmem:[%s5 + $0xd8] sm:$0xf]
  %v1313 = vld [vmem:[%s5 + $0xdc] sm:$0xf]
  %v1314 = vld [vmem:[%s5 + $0xe0] sm:$0xf]
  %v1315 = vld [vmem:[%s5 + $0xe4] sm:$0xf]
  %v1316 = vld [vmem:[%s5 + $0xe8] sm:$0xf]
  %v1317 = vld [vmem:[%s5 + $0xec] sm:$0xf]
  %v1318 = vld [vmem:[%s5 + $0xf0] sm:$0xf]
  %v1319 = vld [vmem:[%s5 + $0xf4] sm:$0xf]
  %v1320 = vld [vmem:[%s5 + $0xf8] sm:$0xf]
  %v1321 = vld [vmem:[%s5 + $0xfc] sm:$0xf]
  %v1322 = vld [vmem:[%s5 + $0x100] sm:$0xf]
  %v1323 = vld [vmem:[%s5 + $0x104] sm:$0xf]
  %v1324 = vld [vmem:[%s5 + $0x108] sm:$0xf]
  %v1325 = vld [vmem:[%s5 + $0x10c] sm:$0xf]
  %v1326 = vld [vmem:[%s5 + $0x110] sm:$0xf]
  %v1327 = vld [vmem:[%s5 + $0x114] sm:$0xf]
  %v1328 = vld [vmem:[%s5 + $0x118] sm:$0xf]
  %v1329 = vld [vmem:[%s5 + $0x11c] sm:$0xf]
  %v1330 = vld [vmem:[%s5 + $0x120] sm:$0xf]
  %v1331 = vld [vmem:[%s5 + $0x124] sm:$0xf]
  %v1332 = vld [vmem:[%s5 + $0x128] sm:$0xf]
  %v1333 = vld [vmem:[%s5 + $0x12c] sm:$0xf]
  %v1334 = vld [vmem:[%s5 + $0x130] sm:$0xf]
  %v1335 = vld [vmem:[%s5 + $0x134] sm:$0xf]
  %v1336 = vld [vmem:[%s5 + $0x138] sm:$0xf]
  %v1337 = vld [vmem:[%s5 + $0x13c] sm:$0xf]
  %v1338 = vld [vmem:[%s6] sm:$0x1]
  %v1340 = vlaneseq
  %v1341 = vshrl.u32 %v1340, 7
  %v1342 = vsub.s32 0, %v1341
  %v1343 = vrot.slane %v1338, %v1342
  %v1425 = vunpack.c.l.b16 %v1258
  %v1426 = vunpack.c.l.b16 %v1259
  %v1427 = vunpack.c.l.b16 %v1260
  %v1428 = vunpack.c.l.b16 %v1261
  %v1429 = vunpack.c.l.b16 %v1262
  %v1430 = vunpack.c.l.b16 %v1263
  %v1431 = vunpack.c.l.b16 %v1264
  %v1432 = vunpack.c.l.b16 %v1265
  %v1433 = vunpack.c.l.b16 %v1266
  %v1434 = vunpack.c.l.b16 %v1267
  %v1435 = vunpack.c.l.b16 %v1268
  %v1436 = vunpack.c.l.b16 %v1269
  %v1437 = vunpack.c.l.b16 %v1270
  %v1438 = vunpack.c.l.b16 %v1271
  %v1439 = vunpack.c.l.b16 %v1272
  %v1440 = vunpack.c.l.b16 %v1273
  %v1441 = vunpack.c.l.b16 %v1274
  %v1442 = vunpack.c.l.b16 %v1275
  %v1443 = vunpack.c.l.b16 %v1276
  %v1444 = vunpack.c.l.b16 %v1277
  %v1445 = vunpack.c.l.b16 %v1278
  %v1446 = vunpack.c.l.b16 %v1279
  %v1447 = vunpack.c.l.b16 %v1280
  %v1448 = vunpack.c.l.b16 %v1281
  %v1449 = vunpack.c.l.b16 %v1282
  %v1450 = vunpack.c.l.b16 %v1283
  %v1451 = vunpack.c.l.b16 %v1284
  %v1452 = vunpack.c.l.b16 %v1285
  %v1453 = vunpack.c.l.b16 %v1286
  %v1454 = vunpack.c.l.b16 %v1287
  %v1455 = vunpack.c.l.b16 %v1288
  %v1456 = vunpack.c.l.b16 %v1289
  %v1457 = vunpack.c.l.b16 %v1290
  %v1458 = vunpack.c.l.b16 %v1291
  %v1459 = vunpack.c.l.b16 %v1292
  %v1460 = vunpack.c.l.b16 %v1293
  %v1461 = vunpack.c.l.b16 %v1294
  %v1462 = vunpack.c.l.b16 %v1295
  %v1463 = vunpack.c.l.b16 %v1296
  %v1464 = vunpack.c.l.b16 %v1297
  %v1465 = vunpack.c.l.b16 %v1298
  %v1466 = vunpack.c.l.b16 %v1299
  %v1467 = vunpack.c.l.b16 %v1300
  %v1468 = vunpack.c.l.b16 %v1301
  %v1469 = vunpack.c.l.b16 %v1302
  %v1470 = vunpack.c.l.b16 %v1303
  %v1471 = vunpack.c.l.b16 %v1304
  %v1472 = vunpack.c.l.b16 %v1305
  %v1473 = vunpack.c.l.b16 %v1306
  %v1474 = vunpack.c.l.b16 %v1307
  %v1475 = vunpack.c.l.b16 %v1308
  %v1476 = vunpack.c.l.b16 %v1309
  %v1477 = vunpack.c.l.b16 %v1310
  %v1478 = vunpack.c.l.b16 %v1311
  %v1479 = vunpack.c.l.b16 %v1312
  %v1480 = vunpack.c.l.b16 %v1313
  %v1481 = vunpack.c.l.b16 %v1314
  %v1482 = vunpack.c.l.b16 %v1315
  %v1483 = vunpack.c.l.b16 %v1316
  %v1484 = vunpack.c.l.b16 %v1317
  %v1485 = vunpack.c.l.b16 %v1318
  %v1486 = vunpack.c.l.b16 %v1319
  %v1487 = vunpack.c.l.b16 %v1320
  %v1488 = vunpack.c.l.b16 %v1321
  %v1489 = vunpack.c.l.b16 %v1322
  %v1490 = vunpack.c.l.b16 %v1323
  %v1491 = vunpack.c.l.b16 %v1324
  %v1492 = vunpack.c.l.b16 %v1325
  %v1493 = vunpack.c.l.b16 %v1326
  %v1494 = vunpack.c.l.b16 %v1327
  %v1495 = vunpack.c.l.b16 %v1328
  %v1496 = vunpack.c.l.b16 %v1329
  %v1497 = vunpack.c.l.b16 %v1330
  %v1498 = vunpack.c.l.b16 %v1331
  %v1499 = vunpack.c.l.b16 %v1332
  %v1500 = vunpack.c.l.b16 %v1333
  %v1501 = vunpack.c.l.b16 %v1334
  %v1502 = vunpack.c.l.b16 %v1335
  %v1503 = vunpack.c.l.b16 %v1336
  %v1504 = vunpack.c.l.b16 %v1337
  %v1505 = vpack.c.b16 %v1426, %v1425
  %v1506 = vpack.c.b16 %v1428, %v1427
  %v1507 = vpack.c.b16 %v1430, %v1429
  %v1508 = vpack.c.b16 %v1432, %v1431
  %v1509 = vpack.c.b16 %v1434, %v1433
  %v1510 = vpack.c.b16 %v1436, %v1435
  %v1511 = vpack.c.b16 %v1438, %v1437
  %v1512 = vpack.c.b16 %v1440, %v1439
  %v1513 = vpack.c.b16 %v1442, %v1441
  %v1514 = vpack.c.b16 %v1444, %v1443
  %v1515 = vpack.c.b16 %v1446, %v1445
  %v1516 = vpack.c.b16 %v1448, %v1447
  %v1517 = vpack.c.b16 %v1450, %v1449
  %v1518 = vpack.c.b16 %v1452, %v1451
  %v1519 = vpack.c.b16 %v1454, %v1453
  %v1520 = vpack.c.b16 %v1456, %v1455
  %v1521 = vpack.c.b16 %v1458, %v1457
  %v1522 = vpack.c.b16 %v1460, %v1459
  %v1523 = vpack.c.b16 %v1462, %v1461
  %v1524 = vpack.c.b16 %v1464, %v1463
  %v1525 = vpack.c.b16 %v1466, %v1465
  %v1526 = vpack.c.b16 %v1468, %v1467
  %v1527 = vpack.c.b16 %v1470, %v1469
  %v1528 = vpack.c.b16 %v1472, %v1471
  %v1529 = vpack.c.b16 %v1474, %v1473
  %v1530 = vpack.c.b16 %v1476, %v1475
  %v1531 = vpack.c.b16 %v1478, %v1477
  %v1532 = vpack.c.b16 %v1480, %v1479
  %v1533 = vpack.c.b16 %v1482, %v1481
  %v1534 = vpack.c.b16 %v1484, %v1483
  %v1535 = vpack.c.b16 %v1486, %v1485
  %v1536 = vpack.c.b16 %v1488, %v1487
  %v1537 = vpack.c.b16 %v1490, %v1489
  %v1538 = vpack.c.b16 %v1492, %v1491
  %v1539 = vpack.c.b16 %v1494, %v1493
  %v1540 = vpack.c.b16 %v1496, %v1495
  %v1541 = vpack.c.b16 %v1498, %v1497
  %v1542 = vpack.c.b16 %v1500, %v1499
  %v1543 = vpack.c.b16 %v1502, %v1501
  %v1544 = vpack.c.b16 %v1504, %v1503
  %1585 = vmatprep.subr.bf16.mxu0 0
  %1586 = vmatpush1.bf16.msra.mxu0 %v1505
  %1587 = vmatprep.subr.bf16.mxu0 0
  %1588 = vmatpush1.bf16.msra.mxu0 %v1506
  %1589 = vmatprep.subr.bf16.mxu0 0
  %1590 = vmatpush1.bf16.msra.mxu0 %v1507
  %1591 = vmatprep.subr.bf16.mxu0 0
  %1592 = vmatpush1.bf16.msra.mxu0 %v1508
  %1593 = vmatprep.subr.bf16.mxu0 0
  %1594 = vmatpush1.bf16.msra.mxu0 %v1509
  %1595 = vmatprep.subr.bf16.mxu0 0
  %1596 = vmatpush1.bf16.msra.mxu0 %v1510
  %1597 = vmatprep.subr.bf16.mxu0 0
  %1598 = vmatpush1.bf16.msra.mxu0 %v1511
  %1599 = vmatprep.subr.bf16.mxu0 0
  %1600 = vmatpush1.bf16.msra.mxu0 %v1512
  %1601 = vmatprep.subr.bf16.mxu0 0
  %1602 = vmatpush1.bf16.msra.mxu0 %v1513
  %1603 = vmatprep.subr.bf16.mxu0 0
  %1604 = vmatpush1.bf16.msra.mxu0 %v1514
  %1605 = vmatprep.subr.bf16.mxu0 0
  %1606 = vmatpush1.bf16.msra.mxu0 %v1515
  %1607 = vmatprep.subr.bf16.mxu0 0
  %1608 = vmatpush1.bf16.msra.mxu0 %v1516
  %1609 = vmatprep.subr.bf16.mxu0 0
  %1610 = vmatpush1.bf16.msra.mxu0 %v1517
  %1611 = vmatprep.subr.bf16.mxu0 0
  %1612 = vmatpush1.bf16.msra.mxu0 %v1518
  %1613 = vmatprep.subr.bf16.mxu0 0
  %1614 = vmatpush1.bf16.msra.mxu0 %v1519
  %1615 = vmatprep.subr.bf16.mxu0 0
  %1616 = vmatpush1.bf16.msra.mxu0 %v1520
  %1617 = vmatprep.mubr.bf16.mxu0 %v1254
  %1618 = vmatmul.mubr.bf16.gmra.mrb[0].mxu0 %v1253
  %v1619 = vpop.f32.mrb[0].mxu0
  %v1620 = vadd.f32 %v1343, %v1619
  %v1621 = vpop.f32.mrb[0].mxu0
  %v1622 = vpop.f32.mrb[0].mxu0
  %v1623 = vadd.f32 %v1343, %v1622
  %v1624 = vpop.f32.mrb[0].mxu0
  %1625 = vdwg.mxu0
  %1626 = vmatprep.subr.bf16.mxu0 0
  %1627 = vmatpush1.bf16.msra.mxu0 %v1521
  %1628 = vmatprep.subr.bf16.mxu0 0
  %1629 = vmatpush1.bf16.msra.mxu0 %v1522
  %1630 = vmatprep.subr.bf16.mxu0 0
  %1631 = vmatpush1.bf16.msra.mxu0 %v1523
  %1632 = vmatprep.subr.bf16.mxu0 0
  %1633 = vmatpush1.bf16.msra.mxu0 %v1524
  %1634 = vmatprep.subr.bf16.mxu0 0
  %1635 = vmatpush1.bf16.msra.mxu0 %v1525
  %1636 = vmatprep.subr.bf16.mxu0 0
  %1637 = vmatpush1.bf16.msra.mxu0 %v1526
  %1638 = vmatprep.subr.bf16.mxu0 0
  %1639 = vmatpush1.bf16.msra.mxu0 %v1527
  %1640 = vmatprep.subr.bf16.mxu0 0
  %1641 = vmatpush1.bf16.msra.mxu0 %v1528
  %1642 = vmatprep.subr.bf16.mxu0 0
  %1643 = vmatpush1.bf16.msra.mxu0 %v1529
  %1644 = vmatprep.subr.bf16.mxu0 0
  %1645 = vmatpush1.bf16.msra.mxu0 %v1530
  %1646 = vmatprep.subr.bf16.mxu0 0
  %1647 = vmatpush1.bf16.msra.mxu0 %v1531
  %1648 = vmatprep.subr.bf16.mxu0 0
  %1649 = vmatpush1.bf16.msra.mxu0 %v1532
  %1650 = vmatprep.subr.bf16.mxu0 0
  %1651 = vmatpush1.bf16.msra.mxu0 %v1533
  %1652 = vmatprep.subr.bf16.mxu0 0
  %1653 = vmatpush1.bf16.msra.mxu0 %v1534
  %1654 = vmatprep.subr.bf16.mxu0 0
  %1655 = vmatpush1.bf16.msra.mxu0 %v1535
  %1656 = vmatprep.subr.bf16.mxu0 0
  %1657 = vmatpush1.bf16.msra.mxu0 %v1536
  %1658 = vmatprep.mubr.bf16.mxu0 %v1256
  %1659 = vmatmul.mubr.bf16.gmra.mrb[0].mxu0 %v1255
  %v1660 = vpop.f32.mrb[0].mxu0
  %v1661 = vadd.f32 %v1620, %v1660
  %v1662 = vpop.f32.mrb[0].mxu0
  %v1663 = vpop.f32.mrb[0].mxu0
  %v1664 = vadd.f32 %v1623, %v1663
  %v1665 = vpop.f32.mrb[0].mxu0
  %1666 = vdwg.mxu0
  %1667 = vmatprep.subr.bf16.mxu0 0
  %1668 = vmatpush1.bf16.msra.mxu0 %v1537
  %1669 = vmatprep.subr.bf16.mxu0 0
  %1670 = vmatpush1.bf16.msra.mxu0 %v1538
  %1671 = vmatprep.subr.bf16.mxu0 0
  %1672 = vmatpush1.bf16.msra.mxu0 %v1539
  %1673 = vmatprep.subr.bf16.mxu0 0
  %1674 = vmatpush1.bf16.msra.mxu0 %v1540
  %1675 = vmatprep.subr.bf16.mxu0 0
  %1676 = vmatpush1.bf16.msra.mxu0 %v1541
  %1677 = vmatprep.subr.bf16.mxu0 0
  %1678 = vmatpush1.bf16.msra.mxu0 %v1542
  %1679 = vmatprep.subr.bf16.mxu0 0
  %1680 = vmatpush1.bf16.msra.mxu0 %v1543
  %1681 = vmatprep.subr.bf16.mxu0 0
  %1682 = vmatpush1.bf16.msra.mxu0 %v1544
  %1683 = vmatprep.subr.bf16.mxu0 0
  %1684 = vmatpush1.bf16.msra.mxu0 0
  %1685 = vmatprep.subr.bf16.mxu0 0
  %1686 = vmatpush1.bf16.msra.mxu0 0
  %1687 = vmatprep.subr.bf16.mxu0 0
  %1688 = vmatpush1.bf16.msra.mxu0 0
  %1689 = vmatprep.subr.bf16.mxu0 0
  %1690 = vmatpush1.bf16.msra.mxu0 0
  %1691 = vmatprep.subr.bf16.mxu0 0
  %1692 = vmatpush1.bf16.msra.mxu0 0
  %1693 = vmatprep.subr.bf16.mxu0 0
  %1694 = vmatpush1.bf16.msra.mxu0 0
  %1695 = vmatprep.subr.bf16.mxu0 0
  %1696 = vmatpush1.bf16.msra.mxu0 0
  %1697 = vmatprep.subr.bf16.mxu0 0
  %1698 = vmatpush1.bf16.msra.mxu0 0
  %1699 = vmatprep.mubr.bf16.mxu0 0
  %1700 = vmatmul.mubr.bf16.gmra.mrb[0].mxu0 %v1257
  %v1701 = vpop.f32.mrb[0].mxu0
  %v1702 = vadd.f32 %v1661, %v1701
  %v1703 = vpop.f32.mrb[0].mxu0
  %v1704 = vpop.f32.mrb[0].mxu0
  %v1705 = vadd.f32 %v1664, %v1704
  %v1706 = vpop.f32.mrb[0].mxu0
  %1707 = vdwg.mxu0
  %v1708 = vmax.f32 %v1702, 0.0
  %v1709 = vmax.f32 %v1705, 0.0
  %v1710 = vpack.c.bf16 %v1709, %v1708
  %v1711 = vld [vmem:[%s7] sm:$0xf]
  %v1712 = vld [vmem:[%s7 + $0x4] sm:$0xf]
  %v1713 = vld [vmem:[%s7 + $0x8] sm:$0xf]
  %v1714 = vld [vmem:[%s7 + $0xc] sm:$0xf]
  %v1715 = vld [vmem:[%s7 + $0x10] sm:$0xf]
  %v1716 = vld [vmem:[%s7 + $0x14] sm:$0xf]
  %v1717 = vld [vmem:[%s7 + $0x18] sm:$0xf]
  %v1718 = vld [vmem:[%s7 + $0x1c] sm:$0xf]
  %v1719 = vld [vmem:[%s7 + $0x20] sm:$0xf]
  %v1720 = vld [vmem:[%s7 + $0x24] sm:$0xf]
  %v1721 = vld [vmem:[%s7 + $0x28] sm:$0xf]
  %v1722 = vld [vmem:[%s7 + $0x2c] sm:$0xf]
  %v1723 = vld [vmem:[%s7 + $0x30] sm:$0xf]
  %v1724 = vld [vmem:[%s7 + $0x34] sm:$0xf]
  %v1725 = vld [vmem:[%s7 + $0x38] sm:$0xf]
  %v1726 = vld [vmem:[%s7 + $0x3c] sm:$0xf]
  %v1727 = vld [vmem:[%s8] sm:$0x1]
  %v1729 = vlaneseq
  %v1730 = vshrl.u32 %v1729, 7
  %v1731 = vsub.s32 0, %v1730
  %v1732 = vrot.slane %v1727, %v1731
  %v1750 = vunpack.c.l.b16 %v1711
  %v1751 = vunpack.c.l.b16 %v1712
  %v1752 = vunpack.c.l.b16 %v1713
  %v1753 = vunpack.c.l.b16 %v1714
  %v1754 = vunpack.c.l.b16 %v1715
  %v1755 = vunpack.c.l.b16 %v1716
  %v1756 = vunpack.c.l.b16 %v1717
  %v1757 = vunpack.c.l.b16 %v1718
  %v1758 = vunpack.c.l.b16 %v1719
  %v1759 = vunpack.c.l.b16 %v1720
  %v1760 = vunpack.c.l.b16 %v1721
  %v1761 = vunpack.c.l.b16 %v1722
  %v1762 = vunpack.c.l.b16 %v1723
  %v1763 = vunpack.c.l.b16 %v1724
  %v1764 = vunpack.c.l.b16 %v1725
  %v1765 = vunpack.c.l.b16 %v1726
  %v1766 = vpack.c.b16 %v1751, %v1750
  %v1767 = vpack.c.b16 %v1753, %v1752
  %v1768 = vpack.c.b16 %v1755, %v1754
  %v1769 = vpack.c.b16 %v1757, %v1756
  %v1770 = vpack.c.b16 %v1759, %v1758
  %v1771 = vpack.c.b16 %v1761, %v1760
  %v1772 = vpack.c.b16 %v1763, %v1762
  %v1773 = vpack.c.b16 %v1765, %v1764
  %1782 = vmatprep.subr.bf16.mxu0 0
  %1783 = vmatpush1.bf16.msra.mxu0 %v1766
  %1784 = vmatprep.subr.bf16.mxu0 0
  %1785 = vmatpush1.bf16.msra.mxu0 %v1767
  %1786 = vmatprep.subr.bf16.mxu0 0
  %1787 = vmatpush1.bf16.msra.mxu0 %v1768
  %1788 = vmatprep.subr.bf16.mxu0 0
  %1789 = vmatpush1.bf16.msra.mxu0 %v1769
  %1790 = vmatprep.subr.bf16.mxu0 0
  %1791 = vmatpush1.bf16.msra.mxu0 %v1770
  %1792 = vmatprep.subr.bf16.mxu0 0
  %1793 = vmatpush1.bf16.msra.mxu0 %v1771
  %1794 = vmatprep.subr.bf16.mxu0 0
  %1795 = vmatpush1.bf16.msra.mxu0 %v1772
  %1796 = vmatprep.subr.bf16.mxu0 0
  %1797 = vmatpush1.bf16.msra.mxu0 %v1773
  %1798 = vmatprep.subr.bf16.mxu0 0
  %1799 = vmatpush1.bf16.msra.mxu0 0
  %1800 = vmatprep.subr.bf16.mxu0 0
  %1801 = vmatpush1.bf16.msra.mxu0 0
  %1802 = vmatprep.subr.bf16.mxu0 0
  %1803 = vmatpush1.bf16.msra.mxu0 0
  %1804 = vmatprep.subr.bf16.mxu0 0
  %1805 = vmatpush1.bf16.msra.mxu0 0
  %1806 = vmatprep.subr.bf16.mxu0 0
  %1807 = vmatpush1.bf16.msra.mxu0 0
  %1808 = vmatprep.subr.bf16.mxu0 0
  %1809 = vmatpush1.bf16.msra.mxu0 0
  %1810 = vmatprep.subr.bf16.mxu0 0
  %1811 = vmatpush1.bf16.msra.mxu0 0
  %1812 = vmatprep.subr.bf16.mxu0 0
  %1813 = vmatpush1.bf16.msra.mxu0 0
  %1814 = vmatprep.mubr.bf16.mxu0 0
  %1815 = vmatmul.mubr.bf16.gmra.mrb[0].mxu0 %v1710
  %v1816 = vpop.f32.mrb[0].mxu0
  %v1817 = vadd.f32 %v1732, %v1816
  %v1818 = vpop.f32.mrb[0].mxu0
  %v1819 = vpop.f32.mrb[0].mxu0
  %v1820 = vadd.f32 %v1732, %v1819
  %v1821 = vpop.f32.mrb[0].mxu0
  %1822 = vdwg.mxu0
  %v1823 = vxor.u32 %v1817, 2147483648
  %v1824 = vxor.u32 %v1820, 2147483648
  %v1825 = vmul.f32 %v1823, 1.442695
  %v1826 = vpow.pop %v1825
  %v1827 = vmul.f32 %v1824, 1.442695
  %v1828 = vpow.pop %v1827
  %v1829 = vadd.f32 %v1826, 1.0
  %v1830 = vadd.f32 %v1828, 1.0
  %v1831 = vrcp.pop %v1829
  %v1832 = vmul.f32 1.0, %v1831
  %v1833 = vrcp.pop %v1830
  %v1834 = vmul.f32 1.0, %v1833
  %v1835 = vpack.c.bf16 %v1834, %v1832
  %v1837 = vunpack.c.l.b16 %v1835
  %v1838 = vunpack.c.h.b16 %v1835
  %v1839 = vpack.c.b16 %v1837, %v1837
  %v1840 = vpack.c.b16 %v1838, %v1838
  %1843 = vst [vmem:[%s9] sm:$0xf] %v1839
  %1844 = vst [vmem:[%s9 + $0x4] sm:$0xf] %v1840
  // Predicated region
  $region38: #{tictactoe_forward.1} parent=0 // pred_check
    _
  $region39: #{tictactoe_forward.1} parent=0 // pred_check_branch
    %1846 = sbr.rel (0) target = $region41
  $region40: #{tictactoe_forward.1} parent=0 // pred_region
    _
  $region41: #{tictactoe_forward.1} parent=0 // pred_fallthru
    _
  // Predicated region
  $region42: #{tictactoe_forward.1} parent=0 // pred_check
    _
  $region43: #{tictactoe_forward.1} parent=0 // pred_check_branch
    %1848 = sbr.rel (0) target = $region45
  $region44: #{tictactoe_forward.1} parent=0 // pred_region
    _
  $region45: #{tictactoe_forward.1} parent=0 // pred_fallthru
    _

</llo_original>
